<compile_context>
chip_gen: v5e
topology: v5e:2x2
jax: 0.10.0
libtpu: 0.0.40
codegen_flags: <defaults>
</compile_context>

<pallas_src>
import jax
import jax.numpy as jnp
from jax.experimental import pallas as pl
from jax.experimental.pallas import tpu as pltpu


# ---------------------------------------------------------------------------
# Fused Pallas kernel: one grid step = one graph-batch (N nodes, G graphs).
# Weights (w1, wsq, wl2, biases) have constant index_maps -> VMEM-resident.
# ---------------------------------------------------------------------------
def net_ba_fused_kernel(adj_ref, x_ref, pa_ref,
                        w1_ref, wsq_ref, wl2_ref, bias_ref,
                        o_ref):
    f32, bf16 = jnp.float32, jnp.bfloat16
    out_ch = o_ref.shape[-1]

    adj = adj_ref[0]                         # (N, N)      bf16  (block-diag Â)
    x = x_ref[0]                             # (N, IN_PAD) bf16
    pa = pa_ref[0]                           # (G, N)      bf16  (P @ Â)

    biases = bias_ref[...]                   # (8, DIM)    f32
    b1, b2, b3, bl1 = biases[0:1, :], biases[1:2, :], biases[2:3, :], biases[3:4, :]
    bl2 = biases[4:5, :out_ch]

    # conv1 (reassociated): h = relu((Â @ X) @ W1 + b1)
    ax = jnp.dot(adj, x, preferred_element_type=f32)                     # (N, IN_PAD)
    h = jnp.dot(ax.astype(bf16), w1_ref[...], preferred_element_type=f32) + b1
    h = jnp.maximum(h, 0.0)                                              # (N, DIM) f32

    # conv2: h = relu(Â @ (h @ W2) + b2)
    hw = jnp.dot(h.astype(bf16), wsq_ref[0], preferred_element_type=f32)
    h = jnp.dot(adj, hw.astype(bf16), preferred_element_type=f32) + b2
    h = jnp.maximum(h, 0.0)

    # conv3 fused with global_mean_pool: pooled = (P @ Â) @ (h @ W3) + b3
    hw = jnp.dot(h.astype(bf16), wsq_ref[1], preferred_element_type=f32)
    pooled = jnp.dot(pa, hw.astype(bf16), preferred_element_type=f32) + b3   # (G, DIM)

    # lin1 + ReLU
    h = jnp.dot(pooled.astype(bf16), wsq_ref[2], preferred_element_type=f32) + bl1
    h = jnp.maximum(h, 0.0)

    # dropout(p=0.1) -> identity in inference, then lin2
    # TODO(synk): dropout is a no-op here since the forward runs in inference mode.
    out = jnp.dot(h.astype(bf16), wl2_ref[...], preferred_element_type=f32) + bl2

    o_ref[0] = out.astype(o_ref.dtype)                                   # (G, OUT)


def net_ba_forward(adj, x, pa, w1, wsq, wl2, biases):
    """adj: (B,N,N) bf16, x: (B,N,IN_PAD) bf16, pa: (B,G,N) bf16,
    w1: (IN_PAD,DIM) bf16, wsq: (3,DIM,DIM) bf16, wl2: (DIM,OUT) bf16,
    biases: (8,DIM) f32.  Returns (B, G, OUT) f32."""
    b_grid, n, _ = adj.shape
    g = pa.shape[1]
    in_pad = x.shape[2]
    dim = w1.shape[1]
    out_ch = wl2.shape[1]
    return pl.pallas_call(
        net_ba_fused_kernel,
        out_shape=jax.ShapeDtypeStruct((b_grid, g, out_ch), jnp.float32),
        grid=(b_grid,),
        in_specs=[
            pl.BlockSpec((1, n, n), lambda i: (i, 0, 0)),          # adj (per step)
            pl.BlockSpec((1, n, in_pad), lambda i: (i, 0, 0)),     # x   (per step)
            pl.BlockSpec((1, g, n), lambda i: (i, 0, 0)),          # pa  (per step)
            pl.BlockSpec((in_pad, dim), lambda i: (0, 0)),         # w1  (resident)
            pl.BlockSpec((3, dim, dim), lambda i: (0, 0, 0)),      # w2/w3/wl1 (resident)
            pl.BlockSpec((dim, out_ch), lambda i: (0, 0)),         # wl2 (resident)
            pl.BlockSpec((8, dim), lambda i: (0, 0)),              # packed biases (resident)
        ],
        out_specs=pl.BlockSpec((1, g, out_ch), lambda i: (i, 0, 0)),
        compiler_params=pltpu.CompilerParams(
            dimension_semantics=("parallel",)),                    # 2-TC split on v7x
    )(adj, x, pa, w1, wsq, wl2, biases)


# ---------------------------------------------------------------------------
# Glue (plain JAX): adjacency normalization, pooling matrix, parameter init
# ---------------------------------------------------------------------------
def normalized_adjacency(edge_index, num_nodes):
    # Binary adjacency (duplicate edges collapse to 1 -- matches an unweighted
    # GCN; differs from PyG scatter-add only if edge multiplicities matter).
    src, dst = edge_index[0], edge_index[1]
    a = jnp.zeros((num_nodes, num_nodes), jnp.float32).at[src, dst].set(1.0)
    a_hat = a + jnp.eye(num_nodes, dtype=jnp.float32)
    deg = a_hat.sum(axis=1)
    d_inv_sqrt = jnp.where(deg > 0, 1.0 / jnp.sqrt(deg), 0.0)
    return d_inv_sqrt[:, None] * a_hat * d_inv_sqrt[None, :]


def mean_pool_matrix(batch, num_nodes, num_graphs):
    onehot = (batch[None, :] == jnp.arange(num_graphs)[:, None]).astype(jnp.float32)
    counts = jnp.maximum(onehot.sum(axis=1, keepdims=True), 1.0)
    return onehot / counts  # (G, N), rows sum to 1


def glorot(key, shape):
    fan_in, fan_out = shape
    limit = jnp.sqrt(6.0 / (fan_in + fan_out))
    return jax.random.uniform(key, shape, jnp.float32, -limit, limit)


# ---------------------------------------------------------------------------
# References
# ---------------------------------------------------------------------------
def _reference_matched_single(adj, x, pa, w1, wsq, wl2, biases):
    """Pure-JAX reference with the exact dtype/op choreography of the kernel."""
    f32, bf16 = jnp.float32, jnp.bfloat16
    out_ch = wl2.shape[1]
    b1, b2, b3, bl1 = biases[0:1], biases[1:2], biases[2:3], biases[3:4]
    bl2 = biases[4:5, :out_ch]
    ax = jnp.dot(adj, x, preferred_element_type=f32)
    h = jnp.maximum(jnp.dot(ax.astype(bf16), w1, preferred_element_type=f32) + b1, 0.0)
    hw = jnp.dot(h.astype(bf16), wsq[0], preferred_element_type=f32)
    h = jnp.maximum(jnp.dot(adj, hw.astype(bf16), preferred_element_type=f32) + b2, 0.0)
    hw = jnp.dot(h.astype(bf16), wsq[1], preferred_element_type=f32)
    pooled = jnp.dot(pa, hw.astype(bf16), preferred_element_type=f32) + b3
    h = jnp.maximum(jnp.dot(pooled.astype(bf16), wsq[2], preferred_element_type=f32) + bl1, 0.0)
    return jnp.dot(h.astype(bf16), wl2, preferred_element_type=f32) + bl2


def _reference_f32_single(adj, x, pool, w1, b1, w2, b2, w3, b3, wl1, bl1, wl2, bl2):
    """Pure-f32 reference following the original (unfused) PyTorch op order."""
    hp = jax.lax.Precision.HIGHEST
    dot = lambda a, b: jnp.dot(a, b, precision=hp)
    h = jnp.maximum(dot(adj, dot(x, w1)) + b1, 0.0)
    h = jnp.maximum(dot(adj, dot(h, w2)) + b2, 0.0)
    h = dot(adj, dot(h, w3)) + b3
    pooled = dot(pool, h)
    h = jnp.maximum(dot(pooled, wl1) + bl1, 0.0)
    return dot(h, wl2) + bl2


if __name__ == "__main__":
    IN_CH, DIM, OUT_CH = 66, 256, 128            # from NetBA.__init__
    IN_PAD = 128                                 # pad 66 -> 128 lanes (zero-padded)
    NODES_PER_GRAPH, GRAPHS_PER_BATCH = 8, 16
    N = NODES_PER_GRAPH * GRAPHS_PER_BATCH       # 128 nodes per grid step
    NUM_BATCHES = 4                              # grid size ("parallel" axis)

    key = jax.random.PRNGKey(0)
    k = jax.random.split(key, 10)

    # --- per-batch graph structure: ring within each graph, both directions ---
    src, dst = [], []
    for g in range(GRAPHS_PER_BATCH):
        for i in range(NODES_PER_GRAPH):
            u = g * NODES_PER_GRAPH + i
            v = g * NODES_PER_GRAPH + (i + 1) % NODES_PER_GRAPH
            src += [u, v]
            dst += [v, u]
    edge_index = jnp.array([src, dst], dtype=jnp.int32)
    batch_vec = jnp.repeat(jnp.arange(GRAPHS_PER_BATCH, dtype=jnp.int32),
                           NODES_PER_GRAPH)

    adj1 = normalized_adjacency(edge_index, N)                 # (N, N) f32
    pool1 = mean_pool_matrix(batch_vec, N, GRAPHS_PER_BATCH)   # (G, N) f32
    pa1 = pool1 @ adj1                                         # pool folded into conv3

    adj_f32 = jnp.tile(adj1[None], (NUM_BATCHES, 1, 1))
    pool_f32 = jnp.tile(pool1[None], (NUM_BATCHES, 1, 1))
    adj = adj_f32.astype(jnp.bfloat16)
    pa = jnp.tile(pa1[None], (NUM_BATCHES, 1, 1)).astype(jnp.bfloat16)

    # --- node features: (B, N, 66) -> zero-pad to 128 lanes ---
    x_f32 = jax.random.normal(k[0], (NUM_BATCHES, N, IN_CH), jnp.float32)
    x = jnp.pad(x_f32, ((0, 0), (0, 0), (0, IN_PAD - IN_CH))).astype(jnp.bfloat16)

    # --- deterministic parameters (shapes from NetBA.__init__) ---
    w1_f32 = glorot(k[1], (IN_CH, DIM))
    w2_f32 = glorot(k[2], (DIM, DIM))
    w3_f32 = glorot(k[3], (DIM, DIM))
    wl1_f32 = glorot(k[4], (DIM, DIM))
    wl2_f32 = glorot(k[5], (DIM, OUT_CH))
    b1_f32 = jnp.zeros((DIM,), jnp.float32)
    b2_f32 = jnp.zeros((DIM,), jnp.float32)
    b3_f32 = jnp.zeros((DIM,), jnp.float32)
    bl1_f32 = jax.random.uniform(k[6], (DIM,), jnp.float32, -0.05, 0.05)
    bl2_f32 = jax.random.uniform(k[7], (OUT_CH,), jnp.float32, -0.05, 0.05)

    # Coalesced kernel operands: bf16 weights, one packed f32 bias slab.
    w1 = jnp.pad(w1_f32, ((0, IN_PAD - IN_CH), (0, 0))).astype(jnp.bfloat16)  # (128,256)
    wsq = jnp.stack([w2_f32, w3_f32, wl1_f32]).astype(jnp.bfloat16)           # (3,256,256)
    wl2 = wl2_f32.astype(jnp.bfloat16)                                        # (256,128)
    biases = jnp.zeros((8, DIM), jnp.float32)
    biases = biases.at[0].set(b1_f32).at[1].set(b2_f32).at[2].set(b3_f32)
    biases = biases.at[3].set(bl1_f32).at[4, :OUT_CH].set(bl2_f32)

    fwd = jax.jit(net_ba_forward)
    out = jax.block_until_ready(fwd(adj, x, pa, w1, wsq, wl2, biases))  # (B, G, 128)

    # 1) dtype-matched reference (identical op order / bf16 choreography)
    ref_matched = jax.vmap(
        lambda a, xx, p: _reference_matched_single(a, xx, p, w1, wsq, wl2, biases)
    )(adj, x, pa)
    err_matched = float(jnp.max(jnp.abs(out - ref_matched)))

    # 2) f32 reference following the original (unfused) PyTorch forward order
    ref_f32 = jax.vmap(
        lambda a, xx, p: _reference_f32_single(
            a, xx, p, w1_f32, b1_f32, w2_f32, b2_f32, w3_f32, b3_f32,
            wl1_f32, bl1_f32, wl2_f32, bl2_f32)
    )(adj_f32, x_f32, pool_f32)
    err_f32 = float(jnp.max(jnp.abs(out - ref_f32)))

    assert out.shape == (NUM_BATCHES, GRAPHS_PER_BATCH, OUT_CH)
    assert bool(jnp.all(jnp.isfinite(out)))
    assert err_matched < 2e-2, f"mismatch vs dtype-matched reference: {err_matched}"
    assert err_f32 < 0.25, f"mismatch vs f32 reference: {err_f32}"
    print("KERNEL_OK")
</pallas_src>

<mosaic_0001>
module attributes {stable_mosaic.version = 11 : i64} {
  func.func @net_ba_fused_kernel(%arg0: i32, %arg1: memref<1x128x128xbf16, #tpu.memory_space<vmem>>, %arg2: memref<1x128x128xbf16, #tpu.memory_space<vmem>>, %arg3: memref<1x16x128xbf16, #tpu.memory_space<vmem>>, %arg4: memref<128x256xbf16, #tpu.memory_space<vmem>>, %arg5: memref<3x256x256xbf16, #tpu.memory_space<vmem>>, %arg6: memref<256x128xbf16, #tpu.memory_space<vmem>>, %arg7: memref<8x256xf32, #tpu.memory_space<vmem>>, %arg8: memref<1x16x128xf32, #tpu.memory_space<vmem>>) attributes {dimension_semantics = [#tpu.dimension_semantics<parallel>], iteration_bounds = array<i64: 4>, scalar_prefetch = 0 : i64, scratch_operands = 0 : i64, tpu.core_type = #tpu.core_type<tc>, window_params = [{transform_indices = @transform_0, window_bounds = array<i64: 1, 128, 128>}, {transform_indices = @transform_1, window_bounds = array<i64: 1, 128, 128>}, {transform_indices = @transform_2, window_bounds = array<i64: 1, 16, 128>}, {pipeline_mode = #tpu.pipeline_mode<synchronous>, transform_indices = @transform_3, window_bounds = array<i64: 128, 256>}, {pipeline_mode = #tpu.pipeline_mode<synchronous>, transform_indices = @transform_4, window_bounds = array<i64: 3, 256, 256>}, {pipeline_mode = #tpu.pipeline_mode<synchronous>, transform_indices = @transform_5, window_bounds = array<i64: 256, 128>}, {pipeline_mode = #tpu.pipeline_mode<synchronous>, transform_indices = @transform_6, window_bounds = array<i64: 8, 256>}, {transform_indices = @transform_7, window_bounds = array<i64: 1, 16, 128>}]} {
    %c0 = arith.constant 0 : index
    %c0_0 = arith.constant 0 : index
    %c0_1 = arith.constant 0 : index
    %0 = vector.load %arg1[%c0, %c0_0, %c0_1] : memref<1x128x128xbf16, #tpu.memory_space<vmem>>, vector<1x128x128xbf16>
    %1 = vector.shape_cast %0 : vector<1x128x128xbf16> to vector<128x128xbf16>
    %c0_2 = arith.constant 0 : index
    %c0_3 = arith.constant 0 : index
    %c0_4 = arith.constant 0 : index
    %2 = vector.load %arg2[%c0_2, %c0_3, %c0_4] : memref<1x128x128xbf16, #tpu.memory_space<vmem>>, vector<1x128x128xbf16>
    %3 = vector.shape_cast %2 : vector<1x128x128xbf16> to vector<128x128xbf16>
    %c0_5 = arith.constant 0 : index
    %c0_6 = arith.constant 0 : index
    %c0_7 = arith.constant 0 : index
    %4 = vector.load %arg3[%c0_5, %c0_6, %c0_7] : memref<1x16x128xbf16, #tpu.memory_space<vmem>>, vector<1x16x128xbf16>
    %5 = vector.shape_cast %4 : vector<1x16x128xbf16> to vector<16x128xbf16>
    %c0_8 = arith.constant 0 : index
    %c0_9 = arith.constant 0 : index
    %6 = vector.load %arg7[%c0_8, %c0_9] : memref<8x256xf32, #tpu.memory_space<vmem>>, vector<8x256xf32>
    %7 = vector.extract_strided_slice %6 {offsets = [0, 0], sizes = [1, 256], strides = [1, 1]} : vector<8x256xf32> to vector<1x256xf32>
    %8 = vector.extract_strided_slice %6 {offsets = [1, 0], sizes = [1, 256], strides = [1, 1]} : vector<8x256xf32> to vector<1x256xf32>
    %9 = vector.extract_strided_slice %6 {offsets = [2, 0], sizes = [1, 256], strides = [1, 1]} : vector<8x256xf32> to vector<1x256xf32>
    %10 = vector.extract_strided_slice %6 {offsets = [3, 0], sizes = [1, 256], strides = [1, 1]} : vector<8x256xf32> to vector<1x256xf32>
    %11 = vector.extract_strided_slice %6 {offsets = [4, 0], sizes = [1, 128], strides = [1, 1]} : vector<8x256xf32> to vector<1x128xf32>
    %cst = arith.constant dense<0.000000e+00> : vector<128x128xf32>
    %12 = tpu.matmul %1, %3, %cst {dimension_numbers = #tpu.dot_dimension_numbers<[1], [0], [0], [1], [0, 0, 1, 1], [], []>} : vector<128x128xbf16>, vector<128x128xbf16>, vector<128x128xf32> -> vector<128x128xf32>
    %13 = arith.truncf %12 : vector<128x128xf32> to vector<128x128xbf16>
    %c0_10 = arith.constant 0 : index
    %c0_11 = arith.constant 0 : index
    %14 = vector.load %arg4[%c0_10, %c0_11] : memref<128x256xbf16, #tpu.memory_space<vmem>>, vector<128x256xbf16>
    %cst_12 = arith.constant dense<0.000000e+00> : vector<128x256xf32>
    %15 = tpu.matmul %13, %14, %cst_12 {dimension_numbers = #tpu.dot_dimension_numbers<[1], [0], [0], [1], [0, 0, 1, 1], [], []>} : vector<128x128xbf16>, vector<128x256xbf16>, vector<128x256xf32> -> vector<128x256xf32>
    %16 = vector.broadcast %7 : vector<1x256xf32> to vector<128x256xf32>
    %17 = arith.addf %15, %16 : vector<128x256xf32>
    %cst_13 = arith.constant 0.000000e+00 : f32
    %18 = vector.broadcast %cst_13 : f32 to vector<128x256xf32>
    %19 = arith.maximumf %17, %18 : vector<128x256xf32>
    %20 = arith.truncf %19 : vector<128x256xf32> to vector<128x256xbf16>
    %c0_14 = arith.constant 0 : index
    %c0_15 = arith.constant 0 : index
    %c0_16 = arith.constant 0 : index
    %21 = vector.load %arg5[%c0_14, %c0_15, %c0_16] : memref<3x256x256xbf16, #tpu.memory_space<vmem>>, vector<1x256x256xbf16>
    %22 = vector.shape_cast %21 : vector<1x256x256xbf16> to vector<256x256xbf16>
    %cst_17 = arith.constant dense<0.000000e+00> : vector<128x256xf32>
    %23 = tpu.matmul %20, %22, %cst_17 {dimension_numbers = #tpu.dot_dimension_numbers<[1], [0], [0], [1], [0, 0, 1, 1], [], []>} : vector<128x256xbf16>, vector<256x256xbf16>, vector<128x256xf32> -> vector<128x256xf32>
    %24 = arith.truncf %23 : vector<128x256xf32> to vector<128x256xbf16>
    %cst_18 = arith.constant dense<0.000000e+00> : vector<128x256xf32>
    %25 = tpu.matmul %1, %24, %cst_18 {dimension_numbers = #tpu.dot_dimension_numbers<[1], [0], [0], [1], [0, 0, 1, 1], [], []>} : vector<128x128xbf16>, vector<128x256xbf16>, vector<128x256xf32> -> vector<128x256xf32>
    %26 = vector.broadcast %8 : vector<1x256xf32> to vector<128x256xf32>
    %27 = arith.addf %25, %26 : vector<128x256xf32>
    %cst_19 = arith.constant 0.000000e+00 : f32
    %28 = vector.broadcast %cst_19 : f32 to vector<128x256xf32>
    %29 = arith.maximumf %27, %28 : vector<128x256xf32>
    %30 = arith.truncf %29 : vector<128x256xf32> to vector<128x256xbf16>
    %c1 = arith.constant 1 : index
    %c0_20 = arith.constant 0 : index
    %c0_21 = arith.constant 0 : index
    %31 = vector.load %arg5[%c1, %c0_20, %c0_21] : memref<3x256x256xbf16, #tpu.memory_space<vmem>>, vector<1x256x256xbf16>
    %32 = vector.shape_cast %31 : vector<1x256x256xbf16> to vector<256x256xbf16>
    %cst_22 = arith.constant dense<0.000000e+00> : vector<128x256xf32>
    %33 = tpu.matmul %30, %32, %cst_22 {dimension_numbers = #tpu.dot_dimension_numbers<[1], [0], [0], [1], [0, 0, 1, 1], [], []>} : vector<128x256xbf16>, vector<256x256xbf16>, vector<128x256xf32> -> vector<128x256xf32>
    %34 = arith.truncf %33 : vector<128x256xf32> to vector<128x256xbf16>
    %cst_23 = arith.constant dense<0.000000e+00> : vector<16x256xf32>
    %35 = tpu.matmul %5, %34, %cst_23 {dimension_numbers = #tpu.dot_dimension_numbers<[1], [0], [0], [1], [0, 0, 1, 1], [], []>} : vector<16x128xbf16>, vector<128x256xbf16>, vector<16x256xf32> -> vector<16x256xf32>
    %36 = vector.broadcast %9 : vector<1x256xf32> to vector<16x256xf32>
    %37 = arith.addf %35, %36 : vector<16x256xf32>
    %38 = arith.truncf %37 : vector<16x256xf32> to vector<16x256xbf16>
    %c2 = arith.constant 2 : index
    %c0_24 = arith.constant 0 : index
    %c0_25 = arith.constant 0 : index
    %39 = vector.load %arg5[%c2, %c0_24, %c0_25] : memref<3x256x256xbf16, #tpu.memory_space<vmem>>, vector<1x256x256xbf16>
    %40 = vector.shape_cast %39 : vector<1x256x256xbf16> to vector<256x256xbf16>
    %cst_26 = arith.constant dense<0.000000e+00> : vector<16x256xf32>
    %41 = tpu.matmul %38, %40, %cst_26 {dimension_numbers = #tpu.dot_dimension_numbers<[1], [0], [0], [1], [0, 0, 1, 1], [], []>} : vector<16x256xbf16>, vector<256x256xbf16>, vector<16x256xf32> -> vector<16x256xf32>
    %42 = vector.broadcast %10 : vector<1x256xf32> to vector<16x256xf32>
    %43 = arith.addf %41, %42 : vector<16x256xf32>
    %cst_27 = arith.constant 0.000000e+00 : f32
    %44 = vector.broadcast %cst_27 : f32 to vector<16x256xf32>
    %45 = arith.maximumf %43, %44 : vector<16x256xf32>
    %46 = arith.truncf %45 : vector<16x256xf32> to vector<16x256xbf16>
    %c0_28 = arith.constant 0 : index
    %c0_29 = arith.constant 0 : index
    %47 = vector.load %arg6[%c0_28, %c0_29] : memref<256x128xbf16, #tpu.memory_space<vmem>>, vector<256x128xbf16>
    %cst_30 = arith.constant dense<0.000000e+00> : vector<16x128xf32>
    %48 = tpu.matmul %46, %47, %cst_30 {dimension_numbers = #tpu.dot_dimension_numbers<[1], [0], [0], [1], [0, 0, 1, 1], [], []>} : vector<16x256xbf16>, vector<256x128xbf16>, vector<16x128xf32> -> vector<16x128xf32>
    %49 = vector.broadcast %11 : vector<1x128xf32> to vector<16x128xf32>
    %50 = arith.addf %48, %49 : vector<16x128xf32>
    %c0_31 = arith.constant 0 : index
    %c0_32 = arith.constant 0 : index
    %c0_33 = arith.constant 0 : index
    %51 = vector.load %arg8[%c0_31, %c0_32, %c0_33] : memref<1x16x128xf32, #tpu.memory_space<vmem>>, vector<1x16x128xf32>
    %52 = vector.shape_cast %51 : vector<1x16x128xf32> to vector<16x128xf32>
    %53 = vector.shape_cast %50 : vector<16x128xf32> to vector<1x16x128xf32>
    tpu.vector_store %arg8[%c0_31, %c0_32, %c0_33], %53 {strides = array<i32>} : memref<1x16x128xf32, #tpu.memory_space<vmem>>, vector<1x16x128xf32>,
    return
  }
  func.func @transform_0(%arg0: i32) -> (i32, i32, i32) {
    %c0_i32 = arith.constant 0 : i32
    %c0_i32_0 = arith.constant 0 : i32
    %c0_i32_1 = arith.constant 0 : i32
    return %arg0, %c0_i32, %c0_i32_0 : i32, i32, i32
  }
  func.func @transform_1(%arg0: i32) -> (i32, i32, i32) {
    %c0_i32 = arith.constant 0 : i32
    %c0_i32_0 = arith.constant 0 : i32
    %c0_i32_1 = arith.constant 0 : i32
    return %arg0, %c0_i32, %c0_i32_0 : i32, i32, i32
  }
  func.func @transform_2(%arg0: i32) -> (i32, i32, i32) {
    %c0_i32 = arith.constant 0 : i32
    %c0_i32_0 = arith.constant 0 : i32
    %c0_i32_1 = arith.constant 0 : i32
    return %arg0, %c0_i32, %c0_i32_0 : i32, i32, i32
  }
  func.func @transform_3(%arg0: i32) -> (i32, i32) {
    %c0_i32 = arith.constant 0 : i32
    %c0_i32_0 = arith.constant 0 : i32
    %c0_i32_1 = arith.constant 0 : i32
    return %c0_i32, %c0_i32_0 : i32, i32
  }
  func.func @transform_4(%arg0: i32) -> (i32, i32, i32) {
    %c0_i32 = arith.constant 0 : i32
    %c0_i32_0 = arith.constant 0 : i32
    %c0_i32_1 = arith.constant 0 : i32
    %c0_i32_2 = arith.constant 0 : i32
    return %c0_i32, %c0_i32_0, %c0_i32_1 : i32, i32, i32
  }
  func.func @transform_5(%arg0: i32) -> (i32, i32) {
    %c0_i32 = arith.constant 0 : i32
    %c0_i32_0 = arith.constant 0 : i32
    %c0_i32_1 = arith.constant 0 : i32
    return %c0_i32, %c0_i32_0 : i32, i32
  }
  func.func @transform_6(%arg0: i32) -> (i32, i32) {
    %c0_i32 = arith.constant 0 : i32
    %c0_i32_0 = arith.constant 0 : i32
    %c0_i32_1 = arith.constant 0 : i32
    return %c0_i32, %c0_i32_0 : i32, i32
  }
  func.func @transform_7(%arg0: i32) -> (i32, i32, i32) {
    %c0_i32 = arith.constant 0 : i32
    %c0_i32_0 = arith.constant 0 : i32
    %c0_i32_1 = arith.constant 0 : i32
    return %arg0, %c0_i32, %c0_i32_0 : i32, i32, i32
  }
}

</mosaic_0001>

<llo_original>
// kernel: net_ba_forward.1
$region0: #{net_ba_forward.1}
  #allocation0 [shape = 'u32[]', space=smem, size = 0x4, offset = 0x4, fixed_abs, tag = 'smem constant byte address 0x4 - core index']
  #allocation1 [shape = 'u32[72,128]{1,0:T(1,128)}', space=vmem, size = 0x9000, scoped, tag = 'internal scratch']
  %s0 = inlined_call_operand.hbm [shape: bf16[4,128,128], index: 0, kind: input, shape index: {}]
  %s1 = inlined_call_operand.hbm [shape: bf16[4,128,128], index: 1, kind: input, shape index: {}]
  %s2 = inlined_call_operand.hbm [shape: bf16[4,16,128], index: 2, kind: input, shape index: {}]
  %s3 = inlined_call_operand.hbm [shape: bf16[128,256], index: 3, kind: input, shape index: {}]
  %s4 = inlined_call_operand.hbm [shape: bf16[3,256,256], index: 4, kind: input, shape index: {}]
  %s5 = inlined_call_operand.hbm [shape: bf16[256,128], index: 5, kind: input, shape index: {}]
  %s6 = inlined_call_operand.hbm [shape: f32[8,256], index: 6, kind: input, shape index: {}]
  %s7 = inlined_call_operand.hbm [shape: f32[4,16,128], index: 7, kind: output, shape index: {}]
  %s8 = sld [smem:[#allocation0]]
  $region89: #{net_ba_forward.1} parent=0
    _
  %s10 = ssub.s32 1, %s8
  %s11 = scalar_select 0, %s10, %s8
  $region1: #{net_ba_forward.1} parent=0
    #allocation2 [shape = 'u8[65536]{0}', space=vmem, size = 0x10000, scoped, tag = 'input window, operand 0']
    #allocation3 [shape = 's32[2]{0}', space=sflag, size = 0x8, scoped, tag = 'scoped memory for net_ba_forward.1']
    #allocation4 [shape = 's32[2]{0}', space=sflag, size = 0x8, scoped, tag = 'scoped memory for net_ba_forward.1']
    #allocation5 [shape = 'u8[65536]{0}', space=vmem, size = 0x10000, scoped, tag = 'input window, operand 1']
    #allocation6 [shape = 's32[2]{0}', space=sflag, size = 0x8, scoped, tag = 'scoped memory for net_ba_forward.1']
    #allocation7 [shape = 'u8[8192]{0}', space=vmem, size = 0x2000, scoped, tag = 'input window, operand 2']
    #allocation8 [shape = 'u8[65536]{0}', space=vmem, size = 0x10000, scoped, tag = 'input window, operand 3, single buffered']
    #allocation9 [shape = 's32[1]{0}', space=sflag, size = 0x4, scoped, tag = 'scoped memory for net_ba_forward.1']
    #allocation10 [shape = 'u8[393216]{0}', space=vmem, size = 0x60000, scoped, tag = 'input window, operand 4, single buffered']
    #allocation11 [shape = 'u8[65536]{0}', space=vmem, size = 0x10000, scoped, tag = 'input window, operand 5, single buffered']
    #allocation12 [shape = 's32[1]{0}', space=sflag, size = 0x4, scoped, tag = 'scoped memory for net_ba_forward.1']
    #allocation13 [shape = 'u8[8192]{0}', space=vmem, size = 0x2000, scoped, tag = 'input window, operand 6, single buffered']
    #allocation14 [shape = 'u8[16384]{0}', space=vmem, size = 0x4000, scoped, tag = 'output window, operand 0']
    %12 = vsyncpa [#allocation3], 0
    %s13 = scalar_lea.sflag [#allocation3], 1
    %14 = vsyncpa %s13, 0
    %15 = vsyncpa [#allocation6], 0
    %s16 = scalar_lea.sflag [#allocation6], 1
    %17 = vsyncpa %s16, 0
    %18 = vsyncpa [#allocation9], 0
    %19 = vsyncpa [#allocation12], 0
    %20 = vsyncpa [#allocation4], 0
    %s21 = scalar_lea.sflag [#allocation4], 1
    %22 = vsyncpa %s21, 0
    loop: start=0, step=1, limit=6
    $region2: #{net_ba_forward.1} parent=1 // loop_pre_header
      _
    $region3: #{net_ba_forward.1} parent=1 // loop_header
      %s24 = sphi 0, %s28
      %p25 = scmp.ge.s32.totalorder %s24, 6
      %s34 = sphi 0, %s36
      %s37 = sphi 0, %s34
      %s38 = sphi 0, %s37
      %s54 = sphi 0, %s38
      %s60 = sphi 0, %s62
      %s63 = sphi 0, %s60
      %s64 = sphi 0, %s63
      %s80 = sphi 0, %s64
      %s86 = sphi 0, %s88
      %s89 = sphi 0, %s86
      %s90 = sphi 0, %s89
      %s106 = sphi 0, %s90
      %s110 = sphi 0, %s110
      %s112 = sphi 0, %s110
      %s113 = sphi 0, %s112
      %s127 = sphi 0, %s113
      %s131 = sphi 0, %s131
      %s133 = sphi 0, %s131
      %s134 = sphi 0, %s133
      %s148 = sphi 0, %s134
      %s152 = sphi 0, %s152
      %s154 = sphi 0, %s152
      %s155 = sphi 0, %s154
      %s169 = sphi 0, %s155
      %s173 = sphi 0, %s173
      %s175 = sphi 0, %s173
      %s176 = sphi 0, %s175
      %s190 = sphi 0, %s176
      %s196 = sphi 0, %s198
      %s199 = sphi 0, %s196
      %s200 = sphi 0, %s199
      %s216 = sphi 0, %s200
    $region4: #{net_ba_forward.1} parent=1 // loop_header_branch
      %27 = sbr.rel (%p25) target = $region8
    $region5: #{net_ba_forward.1} parent=1 // loop_body
      %s29 = ssub.s32 %s24, 1
      %s30 = ssub.s32 %s24, 2
      %s31 = sadd.s32 %s24, 1
      %s32 = ssub.s32 %s24, %s31
      %p33 = scmp.eq.s32.totalorder %s32, 0
      %s35 = sadd.s32 %s34, 1
      %s36 = scalar_select %p33, %s34, %s35
      %p39 = pneg %p33
      %p40 = scmp.eq.s32.totalorder %s24, 3
      %p41 = por %p39, %p40
      %p42 = scmp.ne.s32.totalorder %s34, %s37
      %p43 = scmp.eq.s32.totalorder %s24, 0
      %p44 = por %p42, %p43
      %p45 = scmp.ne.s32.totalorder %s34, %s37
      %p46 = scmp.eq.s32.totalorder %s29, 3
      %p47 = por %p45, %p46
      %p48 = scmp.ne.s32.totalorder %s37, %s38
      %p49 = scmp.eq.s32.totalorder %s29, 0
      %p50 = por %p48, %p49
      %p51 = scmp.ne.s32.totalorder %s37, %s38
      %p52 = scmp.eq.s32.totalorder %s30, 3
      %p53 = por %p51, %p52
      %p55 = scmp.ne.s32.totalorder %s38, %s54
      %p56 = scmp.eq.s32.totalorder %s30, 0
      %p57 = por %p55, %p56
      %s58 = ssub.s32 %s24, %s31
      %p59 = scmp.eq.s32.totalorder %s58, 0
      %s61 = sadd.s32 %s60, 1
      %s62 = scalar_select %p59, %s60, %s61
      %p65 = pneg %p59
      %p66 = scmp.eq.s32.totalorder %s24, 3
      %p67 = por %p65, %p66
      %p68 = scmp.ne.s32.totalorder %s60, %s63
      %p69 = scmp.eq.s32.totalorder %s24, 0
      %p70 = por %p68, %p69
      %p71 = scmp.ne.s32.totalorder %s60, %s63
      %p72 = scmp.eq.s32.totalorder %s29, 3
      %p73 = por %p71, %p72
      %p74 = scmp.ne.s32.totalorder %s63, %s64
      %p75 = scmp.eq.s32.totalorder %s29, 0
      %p76 = por %p74, %p75
      %p77 = scmp.ne.s32.totalorder %s63, %s64
      %p78 = scmp.eq.s32.totalorder %s30, 3
      %p79 = por %p77, %p78
      %p81 = scmp.ne.s32.totalorder %s64, %s80
      %p82 = scmp.eq.s32.totalorder %s30, 0
      %p83 = por %p81, %p82
      %s84 = ssub.s32 %s24, %s31
      %p85 = scmp.eq.s32.totalorder %s84, 0
      %s87 = sadd.s32 %s86, 1
      %s88 = scalar_select %p85, %s86, %s87
      %p91 = pneg %p85
      %p92 = scmp.eq.s32.totalorder %s24, 3
      %p93 = por %p91, %p92
      %p94 = scmp.ne.s32.totalorder %s86, %s89
      %p95 = scmp.eq.s32.totalorder %s24, 0
      %p96 = por %p94, %p95
      %p97 = scmp.ne.s32.totalorder %s86, %s89
      %p98 = scmp.eq.s32.totalorder %s29, 3
      %p99 = por %p97, %p98
      %p100 = scmp.ne.s32.totalorder %s89, %s90
      %p101 = scmp.eq.s32.totalorder %s29, 0
      %p102 = por %p100, %p101
      %p103 = scmp.ne.s32.totalorder %s89, %s90
      %p104 = scmp.eq.s32.totalorder %s30, 3
      %p105 = por %p103, %p104
      %p107 = scmp.ne.s32.totalorder %s90, %s106
      %p108 = scmp.eq.s32.totalorder %s30, 0
      %p109 = por %p107, %p108
      %s111 = sadd.s32 %s110, 1
      %p114 = scmp.eq.s32.totalorder %s24, 3
      %p115 = scmp.ne.s32.totalorder %s110, %s112
      %p116 = scmp.eq.s32.totalorder %s24, 0
      %p117 = por %p115, %p116
      %p118 = scmp.ne.s32.totalorder %s110, %s112
      %p119 = scmp.eq.s32.totalorder %s29, 3
      %p120 = por %p118, %p119
      %p121 = scmp.ne.s32.totalorder %s112, %s113
      %p122 = scmp.eq.s32.totalorder %s29, 0
      %p123 = por %p121, %p122
      %p124 = scmp.ne.s32.totalorder %s112, %s113
      %p125 = scmp.eq.s32.totalorder %s30, 3
      %p126 = por %p124, %p125
      %p128 = scmp.ne.s32.totalorder %s113, %s127
      %p129 = scmp.eq.s32.totalorder %s30, 0
      %p130 = por %p128, %p129
      %s132 = sadd.s32 %s131, 1
      %p135 = scmp.eq.s32.totalorder %s24, 3
      %p136 = scmp.ne.s32.totalorder %s131, %s133
      %p137 = scmp.eq.s32.totalorder %s24, 0
      %p138 = por %p136, %p137
      %p139 = scmp.ne.s32.totalorder %s131, %s133
      %p140 = scmp.eq.s32.totalorder %s29, 3
      %p141 = por %p139, %p140
      %p142 = scmp.ne.s32.totalorder %s133, %s134
      %p143 = scmp.eq.s32.totalorder %s29, 0
      %p144 = por %p142, %p143
      %p145 = scmp.ne.s32.totalorder %s133, %s134
      %p146 = scmp.eq.s32.totalorder %s30, 3
      %p147 = por %p145, %p146
      %p149 = scmp.ne.s32.totalorder %s134, %s148
      %p150 = scmp.eq.s32.totalorder %s30, 0
      %p151 = por %p149, %p150
      %s153 = sadd.s32 %s152, 1
      %p156 = scmp.eq.s32.totalorder %s24, 3
      %p157 = scmp.ne.s32.totalorder %s152, %s154
      %p158 = scmp.eq.s32.totalorder %s24, 0
      %p159 = por %p157, %p158
      %p160 = scmp.ne.s32.totalorder %s152, %s154
      %p161 = scmp.eq.s32.totalorder %s29, 3
      %p162 = por %p160, %p161
      %p163 = scmp.ne.s32.totalorder %s154, %s155
      %p164 = scmp.eq.s32.totalorder %s29, 0
      %p165 = por %p163, %p164
      %p166 = scmp.ne.s32.totalorder %s154, %s155
      %p167 = scmp.eq.s32.totalorder %s30, 3
      %p168 = por %p166, %p167
      %p170 = scmp.ne.s32.totalorder %s155, %s169
      %p171 = scmp.eq.s32.totalorder %s30, 0
      %p172 = por %p170, %p171
      %s174 = sadd.s32 %s173, 1
      %p177 = scmp.eq.s32.totalorder %s24, 3
      %p178 = scmp.ne.s32.totalorder %s173, %s175
      %p179 = scmp.eq.s32.totalorder %s24, 0
      %p180 = por %p178, %p179
      %p181 = scmp.ne.s32.totalorder %s173, %s175
      %p182 = scmp.eq.s32.totalorder %s29, 3
      %p183 = por %p181, %p182
      %p184 = scmp.ne.s32.totalorder %s175, %s176
      %p185 = scmp.eq.s32.totalorder %s29, 0
      %p186 = por %p184, %p185
      %p187 = scmp.ne.s32.totalorder %s175, %s176
      %p188 = scmp.eq.s32.totalorder %s30, 3
      %p189 = por %p187, %p188
      %p191 = scmp.ne.s32.totalorder %s176, %s190
      %p192 = scmp.eq.s32.totalorder %s30, 0
      %p193 = por %p191, %p192
      %s194 = ssub.s32 %s24, %s31
      %p195 = scmp.eq.s32.totalorder %s194, 0
      %s197 = sadd.s32 %s196, 1
      %s198 = scalar_select %p195, %s196, %s197
      %p201 = pneg %p195
      %p202 = scmp.eq.s32.totalorder %s24, 3
      %p203 = por %p201, %p202
      %p204 = scmp.ne.s32.totalorder %s196, %s199
      %p205 = scmp.eq.s32.totalorder %s24, 0
      %p206 = por %p204, %p205
      %p207 = scmp.ne.s32.totalorder %s196, %s199
      %p208 = scmp.eq.s32.totalorder %s29, 3
      %p209 = por %p207, %p208
      %p210 = scmp.ne.s32.totalorder %s199, %s200
      %p211 = scmp.eq.s32.totalorder %s29, 0
      %p212 = por %p210, %p211
      %p213 = scmp.ne.s32.totalorder %s199, %s200
      %p214 = scmp.eq.s32.totalorder %s30, 3
      %p215 = por %p213, %p214
      %p217 = scmp.ne.s32.totalorder %s200, %s216
      %p218 = scmp.eq.s32.totalorder %s30, 0
      %p219 = por %p217, %p218
      %p220 = scmp.le.s32.totalorder 1, %s24
      %p221 = scmp.lt.s32.totalorder %s24, 5
      %p222 = pnand %p220, %p221
      %p223 = pneg %p222
      // Predicated region
      $region9: #{net_ba_forward.1} parent=5 // pred_check
        _
      $region10: #{net_ba_forward.1} parent=5 // pred_check_branch
        %225 = sbr.rel (%p222) target = $region12
      $region11: #{net_ba_forward.1} parent=5 // pred_region
        %s226 = ssub.s32 %s24, 1
        // Predicated region
        $region13: #{net_ba_forward.1} parent=11 // pred_check
          %p227 = pneg %p123
        $region14: #{net_ba_forward.1} parent=11 // pred_check_branch
          %229 = sbr.rel (%p227) target = $region16
        $region15: #{net_ba_forward.1} parent=11 // pred_region
          %231 = vsyncadd [#allocation9], 0
          %s232 = sshll.u32 %s3, 4
          %s233 = int_to_ptr.hbm [resolvable:$true] %s232
          %s234 = sshll.u32 [#allocation8], 4
          %s235 = int_to_ptr.vmem [resolvable:$true] %s234
          %240 = dma.hbm_to_vmem [thread:$0]  %s233, 2048, %s235, [#allocation9], 128, 128, 8
        $region16: #{net_ba_forward.1} parent=11 // pred_fallthru
          _
        // Predicated region
        $region17: #{net_ba_forward.1} parent=11 // pred_check
          %p241 = pneg %p144
        $region18: #{net_ba_forward.1} parent=11 // pred_check_branch
          %243 = sbr.rel (%p241) target = $region20
        $region19: #{net_ba_forward.1} parent=11 // pred_region
          %245 = vsyncadd [#allocation9], 0
          %s246 = sshll.u32 %s4, 4
          %s247 = int_to_ptr.hbm [resolvable:$true] %s246
          %s248 = sshll.u32 [#allocation10], 4
          %s249 = int_to_ptr.vmem [resolvable:$true] %s248
          %254 = dma.hbm_to_vmem [thread:$0]  %s247, 12288, %s249, [#allocation9], 128, 128, 8
        $region20: #{net_ba_forward.1} parent=11 // pred_fallthru
          _
        // Predicated region
        $region21: #{net_ba_forward.1} parent=11 // pred_check
          %p255 = pneg %p165
        $region22: #{net_ba_forward.1} parent=11 // pred_check_branch
          %257 = sbr.rel (%p255) target = $region24
        $region23: #{net_ba_forward.1} parent=11 // pred_region
          %259 = vsyncadd [#allocation12], 0
          %s260 = sshll.u32 %s5, 4
          %s261 = int_to_ptr.hbm [resolvable:$true] %s260
          %s262 = sshll.u32 [#allocation11], 4
          %s263 = int_to_ptr.vmem [resolvable:$true] %s262
          %268 = dma.hbm_to_vmem [thread:$0]  %s261, 2048, %s263, [#allocation12], 64, 64, 4
        $region24: #{net_ba_forward.1} parent=11 // pred_fallthru
          _
        // Predicated region
        $region25: #{net_ba_forward.1} parent=11 // pred_check
          %p269 = pneg %p186
        $region26: #{net_ba_forward.1} parent=11 // pred_check_branch
          %271 = sbr.rel (%p269) target = $region28
        $region27: #{net_ba_forward.1} parent=11 // pred_region
          %273 = vsyncadd [#allocation12], 0
          %s275 = sshll.u32 %s6, 4
          %s276 = int_to_ptr.hbm [resolvable:$true] %s275
          %s277 = sshll.u32 [#allocation13], 4
          %s278 = int_to_ptr.vmem [resolvable:$true] %s277
          %280 = dma.hbm_to_vmem [thread:$0]  %s276, 256, %s278, [#allocation12]
        $region28: #{net_ba_forward.1} parent=11 // pred_fallthru
          _
      $region12: #{net_ba_forward.1} parent=5 // pred_fallthru
        _
      %p281 = scmp.lt.s32.totalorder %s24, 4
      // Predicated region
      $region29: #{net_ba_forward.1} parent=5 // pred_check
        %p282 = pneg %p281
      $region30: #{net_ba_forward.1} parent=5 // pred_check_branch
        %284 = sbr.rel (%p282) target = $region32
      $region31: #{net_ba_forward.1} parent=5 // pred_region
        // Predicated region
        $region33: #{net_ba_forward.1} parent=31 // pred_check
          %p285 = pneg %p44
        $region34: #{net_ba_forward.1} parent=31 // pred_check_branch
          %287 = sbr.rel (%p285) target = $region36
        $region35: #{net_ba_forward.1} parent=31 // pred_region
          %s288 = sand.u32 %s34, 1
          %s289 = scalar_lea.sflag [#allocation3], %s288
          %s290 = sand.u32 %s34, 1
          %s291 = smul.addr %s290, 64
          %s292 = scalar_lea.vmem [#allocation2], %s291
          %294 = vsyncadd %s289, 0
          %s295 = smul.addr %s24, 16
          %s296 = smul.addr %s295, 4
          %s297 = scalar_lea.hbm %s0, %s296
          %s298 = sshll.u32 %s297, 4
          %s299 = int_to_ptr.hbm [resolvable:$true] %s298
          %s300 = sshll.u32 %s292, 4
          %s301 = int_to_ptr.vmem [resolvable:$true] %s300
          %306 = dma.hbm_to_vmem [thread:$0]  %s299, 1024, %s301, %s289, 64, 64, 4
        $region36: #{net_ba_forward.1} parent=31 // pred_fallthru
          _
        // Predicated region
        $region37: #{net_ba_forward.1} parent=31 // pred_check
          %p307 = pneg %p70
        $region38: #{net_ba_forward.1} parent=31 // pred_check_branch
          %309 = sbr.rel (%p307) target = $region40
        $region39: #{net_ba_forward.1} parent=31 // pred_region
          %s310 = sand.u32 %s24, 1
          %s311 = scalar_lea.sflag [#allocation6], %s310
          %s312 = sand.u32 %s60, 1
          %s313 = smul.addr %s312, 64
          %s314 = scalar_lea.vmem [#allocation5], %s313
          %316 = vsyncadd %s311, 0
          %s317 = smul.addr %s24, 16
          %s318 = smul.addr %s317, 4
          %s319 = scalar_lea.hbm %s1, %s318
          %s320 = sshll.u32 %s319, 4
          %s321 = int_to_ptr.hbm [resolvable:$true] %s320
          %s322 = sshll.u32 %s314, 4
          %s323 = int_to_ptr.vmem [resolvable:$true] %s322
          %328 = dma.hbm_to_vmem [thread:$0]  %s321, 1024, %s323, %s311, 64, 64, 4
        $region40: #{net_ba_forward.1} parent=31 // pred_fallthru
          _
        // Predicated region
        $region41: #{net_ba_forward.1} parent=31 // pred_check
          %p329 = pneg %p96
        $region42: #{net_ba_forward.1} parent=31 // pred_check_branch
          %331 = sbr.rel (%p329) target = $region44
        $region43: #{net_ba_forward.1} parent=31 // pred_region
          %s332 = sand.u32 %s24, 1
          %s333 = scalar_lea.sflag [#allocation6], %s332
          %s334 = sand.u32 %s86, 1
          %s335 = smul.addr %s334, 8
          %s336 = scalar_lea.vmem [#allocation7], %s335
          %338 = vsyncadd %s333, 0
          %s339 = smul.addr %s24, 2
          %s340 = smul.addr %s339, 4
          %s341 = scalar_lea.hbm %s2, %s340
          %s342 = sshll.u32 %s341, 4
          %s343 = int_to_ptr.hbm [resolvable:$true] %s342
          %s344 = sshll.u32 %s336, 4
          %s345 = int_to_ptr.vmem [resolvable:$true] %s344
          %350 = dma.hbm_to_vmem [thread:$0]  %s343, 128, %s345, %s333, 64, 64, 4
        $region44: #{net_ba_forward.1} parent=31 // pred_fallthru
          _
      $region32: #{net_ba_forward.1} parent=5 // pred_fallthru
        _
      %p351 = scmp.le.s32.totalorder 1, %s24
      %p352 = scmp.lt.s32.totalorder %s24, 5
      %p353 = pnand %p351, %p352
      %p354 = pneg %p353
      // Predicated region
      $region45: #{net_ba_forward.1} parent=5 // pred_check
        _
      $region46: #{net_ba_forward.1} parent=5 // pred_check_branch
        %356 = sbr.rel (%p353) target = $region48
      $region47: #{net_ba_forward.1} parent=5 // pred_region
        %s357 = ssub.s32 %s24, 1
        %s358 = sand.u32 %s37, 1
        %s359 = scalar_lea.sflag [#allocation3], %s358
        %s360 = sand.u32 %s37, 1
        %s361 = smul.addr %s360, 64
        %s362 = scalar_lea.vmem [#allocation2], %s361
        // Predicated region
        $region49: #{net_ba_forward.1} parent=47 // pred_check
          %p363 = pneg %p50
        $region50: #{net_ba_forward.1} parent=47 // pred_check_branch
          %365 = sbr.rel (%p363) target = $region52
        $region51: #{net_ba_forward.1} parent=47 // pred_region
          %367 = dma.done %s359, 1024
        $region52: #{net_ba_forward.1} parent=47 // pred_fallthru
          _
        %s368 = sand.u32 %s29, 1
        %s369 = scalar_lea.sflag [#allocation6], %s368
        %s370 = sand.u32 %s63, 1
        %s371 = smul.addr %s370, 64
        %s372 = scalar_lea.vmem [#allocation5], %s371
        // Predicated region
        $region53: #{net_ba_forward.1} parent=47 // pred_check
          %p373 = pneg %p76
        $region54: #{net_ba_forward.1} parent=47 // pred_check_branch
          %375 = sbr.rel (%p373) target = $region56
        $region55: #{net_ba_forward.1} parent=47 // pred_region
          %377 = dma.done %s369, 1024
        $region56: #{net_ba_forward.1} parent=47 // pred_fallthru
          _
        %s378 = sand.u32 %s29, 1
        %s379 = scalar_lea.sflag [#allocation6], %s378
        %s380 = sand.u32 %s89, 1
        %s381 = smul.addr %s380, 8
        %s382 = scalar_lea.vmem [#allocation7], %s381
        // Predicated region
        $region57: #{net_ba_forward.1} parent=47 // pred_check
          %p383 = pneg %p102
        $region58: #{net_ba_forward.1} parent=47 // pred_check_branch
          %385 = sbr.rel (%p383) target = $region60
        $region59: #{net_ba_forward.1} parent=47 // pred_region
          %387 = dma.done %s379, 128
        $region60: #{net_ba_forward.1} parent=47 // pred_fallthru
          _
        // Predicated region
        $region61: #{net_ba_forward.1} parent=47 // pred_check
          %p388 = pneg %p123
        $region62: #{net_ba_forward.1} parent=47 // pred_check_branch
          %390 = sbr.rel (%p388) target = $region64
        $region63: #{net_ba_forward.1} parent=47 // pred_region
          %392 = dma.done [#allocation9], 2048
        $region64: #{net_ba_forward.1} parent=47 // pred_fallthru
          _
        // Predicated region
        $region65: #{net_ba_forward.1} parent=47 // pred_check
          %p393 = pneg %p144
        $region66: #{net_ba_forward.1} parent=47 // pred_check_branch
          %395 = sbr.rel (%p393) target = $region68
        $region67: #{net_ba_forward.1} parent=47 // pred_region
          %397 = dma.done [#allocation9], 12288
        $region68: #{net_ba_forward.1} parent=47 // pred_fallthru
          _
        // Predicated region
        $region69: #{net_ba_forward.1} parent=47 // pred_check
          %p398 = pneg %p165
        $region70: #{net_ba_forward.1} parent=47 // pred_check_branch
          %400 = sbr.rel (%p398) target = $region72
        $region71: #{net_ba_forward.1} parent=47 // pred_region
          %402 = dma.done [#allocation12], 2048
        $region72: #{net_ba_forward.1} parent=47 // pred_fallthru
          _
        // Predicated region
        $region73: #{net_ba_forward.1} parent=47 // pred_check
          %p403 = pneg %p186
        $region74: #{net_ba_forward.1} parent=47 // pred_check_branch
          %405 = sbr.rel (%p403) target = $region76
        $region75: #{net_ba_forward.1} parent=47 // pred_region
          %407 = dma.done [#allocation12], 256
        $region76: #{net_ba_forward.1} parent=47 // pred_fallthru
          _
        %s408 = sand.u32 %s37, 1
        %s409 = scalar_lea.sflag [#allocation3], %s408
        %s410 = sand.u32 %s37, 1
        %s411 = smul.addr %s410, 64
        %s412 = scalar_lea.vmem [#allocation2], %s411
        %p413 = pneg %p50
        %p414 = pneg %p47
        %s415 = sand.u32 %s29, 1
        %s416 = scalar_lea.sflag [#allocation6], %s415
        %s417 = sand.u32 %s63, 1
        %s418 = smul.addr %s417, 64
        %s419 = scalar_lea.vmem [#allocation5], %s418
        %p420 = pneg %p76
        %p421 = pneg %p73
        %s422 = sand.u32 %s29, 1
        %s423 = scalar_lea.sflag [#allocation6], %s422
        %s424 = sand.u32 %s89, 1
        %s425 = smul.addr %s424, 8
        %s426 = scalar_lea.vmem [#allocation7], %s425
        %p427 = pneg %p102
        %p428 = pneg %p99
        %p429 = pneg %p123
        %p430 = pneg %p120
        %p431 = pneg %p144
        %p432 = pneg %p141
        %p433 = pneg %p165
        %p434 = pneg %p162
        %p435 = pneg %p186
        %p436 = pneg %p183
        %p437 = pneg %p212
        %p438 = pneg %p209
        %s439 = sand.u32 %s199, 1
        %s440 = scalar_lea.sflag [#allocation4], %s439
        %s441 = sand.u32 %s199, 1
        %s442 = smul.addr %s441, 16
        %s443 = scalar_lea.vmem [#allocation14], %s442
        %v444 = vld [vmem:[%s362] sm:$0xf]
        %v445 = vld [vmem:[%s362 + $0x4] sm:$0xf]
        %v446 = vld [vmem:[%s362 + $0x8] sm:$0xf]
        %v447 = vld [vmem:[%s362 + $0xc] sm:$0xf]
        %v448 = vld [vmem:[%s362 + $0x10] sm:$0xf]
        %v449 = vld [vmem:[%s362 + $0x14] sm:$0xf]
        %v450 = vld [vmem:[%s362 + $0x18] sm:$0xf]
        %v451 = vld [vmem:[%s362 + $0x1c] sm:$0xf]
        %v452 = vld [vmem:[%s362 + $0x20] sm:$0xf]
        %v453 = vld [vmem:[%s362 + $0x24] sm:$0xf]
        %v454 = vld [vmem:[%s362 + $0x28] sm:$0xf]
        %v455 = vld [vmem:[%s362 + $0x2c] sm:$0xf]
        %v456 = vld [vmem:[%s362 + $0x30] sm:$0xf]
        %v457 = vld [vmem:[%s362 + $0x34] sm:$0xf]
        %v458 = vld [vmem:[%s362 + $0x38] sm:$0xf]
        %v459 = vld [vmem:[%s362 + $0x3c] sm:$0xf]
        %v460 = vld [vmem:[%s372] sm:$0xf]
        %v461 = vld [vmem:[%s372 + $0x4] sm:$0xf]
        %v462 = vld [vmem:[%s372 + $0x8] sm:$0xf]
        %v463 = vld [vmem:[%s372 + $0xc] sm:$0xf]
        %v464 = vld [vmem:[%s372 + $0x10] sm:$0xf]
        %v465 = vld [vmem:[%s372 + $0x14] sm:$0xf]
        %v466 = vld [vmem:[%s372 + $0x18] sm:$0xf]
        %v467 = vld [vmem:[%s372 + $0x1c] sm:$0xf]
        %v468 = vld [vmem:[%s372 + $0x20] sm:$0xf]
        %v469 = vld [vmem:[%s372 + $0x24] sm:$0xf]
        %v470 = vld [vmem:[%s372 + $0x28] sm:$0xf]
        %v471 = vld [vmem:[%s372 + $0x2c] sm:$0xf]
        %v472 = vld [vmem:[%s372 + $0x30] sm:$0xf]
        %v473 = vld [vmem:[%s372 + $0x34] sm:$0xf]
        %v474 = vld [vmem:[%s372 + $0x38] sm:$0xf]
        %v475 = vld [vmem:[%s372 + $0x3c] sm:$0xf]
        %v476 = vld [vmem:[%s382] sm:$0xf]
        %v477 = vld [vmem:[%s382 + $0x4] sm:$0xf]
        %v478 = vld [vmem:[#allocation13] sm:$0xff]
        %v479 = vld [vmem:[#allocation13 + $0x8] sm:$0xff]
        %v496 = vunpack.c.l.b16 %v444
        %v497 = vunpack.c.l.b16 %v445
        %v498 = vunpack.c.l.b16 %v446
        %v499 = vunpack.c.l.b16 %v447
        %v500 = vunpack.c.l.b16 %v448
        %v501 = vunpack.c.l.b16 %v449
        %v502 = vunpack.c.l.b16 %v450
        %v503 = vunpack.c.l.b16 %v451
        %v504 = vunpack.c.l.b16 %v452
        %v505 = vunpack.c.l.b16 %v453
        %v506 = vunpack.c.l.b16 %v454
        %v507 = vunpack.c.l.b16 %v455
        %v508 = vunpack.c.l.b16 %v456
        %v509 = vunpack.c.l.b16 %v457
        %v510 = vunpack.c.l.b16 %v458
        %v511 = vunpack.c.l.b16 %v459
        %v512 = vpack.c.b16 %v497, %v496
        %v513 = vpack.c.b16 %v499, %v498
        %v514 = vpack.c.b16 %v501, %v500
        %v515 = vpack.c.b16 %v503, %v502
        %v516 = vpack.c.b16 %v505, %v504
        %v517 = vpack.c.b16 %v507, %v506
        %v518 = vpack.c.b16 %v509, %v508
        %v519 = vpack.c.b16 %v511, %v510
        %v544 = vunpack.c.l.b16 %v460
        %v545 = vunpack.c.l.b16 %v461
        %v546 = vunpack.c.l.b16 %v462
        %v547 = vunpack.c.l.b16 %v463
        %v548 = vunpack.c.l.b16 %v464
        %v549 = vunpack.c.l.b16 %v465
        %v550 = vunpack.c.l.b16 %v466
        %v551 = vunpack.c.l.b16 %v467
        %v552 = vunpack.c.l.b16 %v468
        %v553 = vunpack.c.l.b16 %v469
        %v554 = vunpack.c.l.b16 %v470
        %v555 = vunpack.c.l.b16 %v471
        %v556 = vunpack.c.l.b16 %v472
        %v557 = vunpack.c.l.b16 %v473
        %v558 = vunpack.c.l.b16 %v474
        %v559 = vunpack.c.l.b16 %v475
        %v560 = vpack.c.b16 %v545, %v544
        %v561 = vpack.c.b16 %v547, %v546
        %v562 = vpack.c.b16 %v549, %v548
        %v563 = vpack.c.b16 %v551, %v550
        %v564 = vpack.c.b16 %v553, %v552
        %v565 = vpack.c.b16 %v555, %v554
        %v566 = vpack.c.b16 %v557, %v556
        %v567 = vpack.c.b16 %v559, %v558
        %576 = vmatpush.bf16.msra.mxu0 %v567
        %577 = vmatpush.bf16.msra.mxu0 %v566
        %578 = vmatpush.bf16.msra.mxu0 %v565
        %579 = vmatpush.bf16.msra.mxu0 %v564
        %580 = vmatpush.bf16.msra.mxu0 %v563
        %581 = vmatpush.bf16.msra.mxu0 %v562
        %582 = vmatpush.bf16.msra.mxu0 %v561
        %583 = vmatpush.bf16.msra.mxu0 %v560
        %584 = vmatmul.bf16.gmra.mxu0 %v512
        %v585 = vpop.f32.mrf.mxu0
        %v586 = vadd.f32 0.0, %v585
        %v587 = vpop.f32.mrf.mxu0
        %v588 = vadd.f32 0.0, %v587
        %589 = vmatmul.bf16.gmra.mxu0 %v513
        %v590 = vpop.f32.mrf.mxu0
        %v591 = vadd.f32 0.0, %v590
        %v592 = vpop.f32.mrf.mxu0
        %v593 = vadd.f32 0.0, %v592
        %594 = vmatmul.bf16.gmra.mxu0 %v514
        %v595 = vpop.f32.mrf.mxu0
        %v596 = vadd.f32 0.0, %v595
        %v597 = vpop.f32.mrf.mxu0
        %v598 = vadd.f32 0.0, %v597
        %599 = vmatmul.bf16.gmra.mxu0 %v515
        %v600 = vpop.f32.mrf.mxu0
        %v601 = vadd.f32 0.0, %v600
        %v602 = vpop.f32.mrf.mxu0
        %v603 = vadd.f32 0.0, %v602
        %604 = vmatmul.bf16.gmra.mxu0 %v516
        %v605 = vpop.f32.mrf.mxu0
        %v606 = vadd.f32 0.0, %v605
        %v607 = vpop.f32.mrf.mxu0
        %v608 = vadd.f32 0.0, %v607
        %609 = vmatmul.bf16.gmra.mxu0 %v517
        %v610 = vpop.f32.mrf.mxu0
        %v611 = vadd.f32 0.0, %v610
        %v612 = vpop.f32.mrf.mxu0
        %v613 = vadd.f32 0.0, %v612
        %614 = vmatmul.bf16.gmra.mxu0 %v518
        %v615 = vpop.f32.mrf.mxu0
        %v616 = vadd.f32 0.0, %v615
        %v617 = vpop.f32.mrf.mxu0
        %v618 = vadd.f32 0.0, %v617
        %619 = vmatmul.bf16.gmra.mxu0 %v519
        %v620 = vpop.f32.mrf.mxu0
        %v621 = vadd.f32 0.0, %v620
        %v622 = vpop.f32.mrf.mxu0
        %v623 = vadd.f32 0.0, %v622
        %624 = vdwg.mxu0
        %v625 = vpack.c.bf16 %v588, %v586
        %v626 = vpack.c.bf16 %v593, %v591
        %v627 = vpack.c.bf16 %v598, %v596
        %v628 = vpack.c.bf16 %v603, %v601
        %v629 = vpack.c.bf16 %v608, %v606
        %v630 = vpack.c.bf16 %v613, %v611
        %v631 = vpack.c.bf16 %v618, %v616
        %v632 = vpack.c.bf16 %v623, %v621
        %v633 = vld [vmem:[#allocation8] sm:$0xff]
        %v634 = vld [vmem:[#allocation8 + $0x8] sm:$0xff]
        %v635 = vld [vmem:[#allocation8 + $0x10] sm:$0xff]
        %v636 = vld [vmem:[#allocation8 + $0x18] sm:$0xff]
        %v637 = vld [vmem:[#allocation8 + $0x20] sm:$0xff]
        %v638 = vld [vmem:[#allocation8 + $0x28] sm:$0xff]
        %v639 = vld [vmem:[#allocation8 + $0x30] sm:$0xff]
        %v640 = vld [vmem:[#allocation8 + $0x38] sm:$0xff]
        %v641 = vld [vmem:[#allocation8 + $0x40] sm:$0xff]
        %v642 = vld [vmem:[#allocation8 + $0x48] sm:$0xff]
        %v643 = vld [vmem:[#allocation8 + $0x50] sm:$0xff]
        %v644 = vld [vmem:[#allocation8 + $0x58] sm:$0xff]
        %v645 = vld [vmem:[#allocation8 + $0x60] sm:$0xff]
        %v646 = vld [vmem:[#allocation8 + $0x68] sm:$0xff]
        %v647 = vld [vmem:[#allocation8 + $0x70] sm:$0xff]
        %v648 = vld [vmem:[#allocation8 + $0x78] sm:$0xff]
        %v649 = vperm.slane %v478, 0
        %v650 = vperm.slane %v479, 0
        %v667 = vunpack.c.l.b16 %v633
        %v668 = vunpack.c.h.b16 %v633
        %v669 = vunpack.c.l.b16 %v634
        %v670 = vunpack.c.h.b16 %v634
        %v671 = vunpack.c.l.b16 %v635
        %v672 = vunpack.c.h.b16 %v635
        %v673 = vunpack.c.l.b16 %v636
        %v674 = vunpack.c.h.b16 %v636
        %v675 = vunpack.c.l.b16 %v637
        %v676 = vunpack.c.h.b16 %v637
        %v677 = vunpack.c.l.b16 %v638
        %v678 = vunpack.c.h.b16 %v638
        %v679 = vunpack.c.l.b16 %v639
        %v680 = vunpack.c.h.b16 %v639
        %v681 = vunpack.c.l.b16 %v640
        %v682 = vunpack.c.h.b16 %v640
        %v683 = vunpack.c.l.b16 %v641
        %v684 = vunpack.c.h.b16 %v641
        %v685 = vunpack.c.l.b16 %v642
        %v686 = vunpack.c.h.b16 %v642
        %v687 = vunpack.c.l.b16 %v643
        %v688 = vunpack.c.h.b16 %v643
        %v689 = vunpack.c.l.b16 %v644
        %v690 = vunpack.c.h.b16 %v644
        %v691 = vunpack.c.l.b16 %v645
        %v692 = vunpack.c.h.b16 %v645
        %v693 = vunpack.c.l.b16 %v646
        %v694 = vunpack.c.h.b16 %v646
        %v695 = vunpack.c.l.b16 %v647
        %v696 = vunpack.c.h.b16 %v647
        %v697 = vunpack.c.l.b16 %v648
        %v698 = vunpack.c.h.b16 %v648
        %v699 = vpack.c.b16 %v669, %v667
        %v700 = vpack.c.b16 %v670, %v668
        %v701 = vpack.c.b16 %v673, %v671
        %v702 = vpack.c.b16 %v674, %v672
        %v703 = vpack.c.b16 %v677, %v675
        %v704 = vpack.c.b16 %v678, %v676
        %v705 = vpack.c.b16 %v681, %v679
        %v706 = vpack.c.b16 %v682, %v680
        %v707 = vpack.c.b16 %v685, %v683
        %v708 = vpack.c.b16 %v686, %v684
        %v709 = vpack.c.b16 %v689, %v687
        %v710 = vpack.c.b16 %v690, %v688
        %v711 = vpack.c.b16 %v693, %v691
        %v712 = vpack.c.b16 %v694, %v692
        %v713 = vpack.c.b16 %v697, %v695
        %v714 = vpack.c.b16 %v698, %v696
        %731 = vmatpush.bf16.msra.mxu0 %v713
        %732 = vmatpush.bf16.msra.mxu0 %v711
        %733 = vmatpush.bf16.msra.mxu0 %v709
        %734 = vmatpush.bf16.msra.mxu0 %v707
        %735 = vmatpush.bf16.msra.mxu0 %v705
        %736 = vmatpush.bf16.msra.mxu0 %v703
        %737 = vmatpush.bf16.msra.mxu0 %v701
        %738 = vmatpush.bf16.msra.mxu0 %v699
        %739 = vmatmul.bf16.gmra.mxu0 %v625
        %v740 = vpop.f32.mrf.mxu0
        %v741 = vadd.f32 %v649, %v740
        %v742 = vpop.f32.mrf.mxu0
        %v743 = vadd.f32 %v649, %v742
        %744 = vmatmul.bf16.gmra.mxu0 %v626
        %v745 = vpop.f32.mrf.mxu0
        %v746 = vadd.f32 %v649, %v745
        %v747 = vpop.f32.mrf.mxu0
        %v748 = vadd.f32 %v649, %v747
        %749 = vmatmul.bf16.gmra.mxu0 %v627
        %v750 = vpop.f32.mrf.mxu0
        %v751 = vadd.f32 %v649, %v750
        %v752 = vpop.f32.mrf.mxu0
        %v753 = vadd.f32 %v649, %v752
        %754 = vmatmul.bf16.gmra.mxu0 %v628
        %v755 = vpop.f32.mrf.mxu0
        %v756 = vadd.f32 %v649, %v755
        %v757 = vpop.f32.mrf.mxu0
        %v758 = vadd.f32 %v649, %v757
        %759 = vmatmul.bf16.gmra.mxu0 %v629
        %v760 = vpop.f32.mrf.mxu0
        %v761 = vadd.f32 %v649, %v760
        %v762 = vpop.f32.mrf.mxu0
        %v763 = vadd.f32 %v649, %v762
        %764 = vmatmul.bf16.gmra.mxu0 %v630
        %v765 = vpop.f32.mrf.mxu0
        %v766 = vadd.f32 %v649, %v765
        %v767 = vpop.f32.mrf.mxu0
        %v768 = vadd.f32 %v649, %v767
        %769 = vmatmul.bf16.gmra.mxu0 %v631
        %v770 = vpop.f32.mrf.mxu0
        %v771 = vadd.f32 %v649, %v770
        %v772 = vpop.f32.mrf.mxu0
        %v773 = vadd.f32 %v649, %v772
        %774 = vmatmul.bf16.gmra.mxu0 %v632
        %v775 = vpop.f32.mrf.mxu0
        %v776 = vadd.f32 %v649, %v775
        %v777 = vpop.f32.mrf.mxu0
        %v778 = vadd.f32 %v649, %v777
        %779 = vdwg.mxu0
        %780 = vmatpush.bf16.msra.mxu0 %v714
        %781 = vmatpush.bf16.msra.mxu0 %v712
        %782 = vmatpush.bf16.msra.mxu0 %v710
        %783 = vmatpush.bf16.msra.mxu0 %v708
        %784 = vmatpush.bf16.msra.mxu0 %v706
        %785 = vmatpush.bf16.msra.mxu0 %v704
        %786 = vmatpush.bf16.msra.mxu0 %v702
        %787 = vmatpush.bf16.msra.mxu0 %v700
        %788 = vmatmul.bf16.gmra.mxu0 %v625
        %v789 = vpop.f32.mrf.mxu0
        %v790 = vadd.f32 %v650, %v789
        %v791 = vpop.f32.mrf.mxu0
        %v792 = vadd.f32 %v650, %v791
        %793 = vmatmul.bf16.gmra.mxu0 %v626
        %v794 = vpop.f32.mrf.mxu0
        %v795 = vadd.f32 %v650, %v794
        %v796 = vpop.f32.mrf.mxu0
        %v797 = vadd.f32 %v650, %v796
        %798 = vmatmul.bf16.gmra.mxu0 %v627
        %v799 = vpop.f32.mrf.mxu0
        %v800 = vadd.f32 %v650, %v799
        %v801 = vpop.f32.mrf.mxu0
        %v802 = vadd.f32 %v650, %v801
        %803 = vmatmul.bf16.gmra.mxu0 %v628
        %v804 = vpop.f32.mrf.mxu0
        %v805 = vadd.f32 %v650, %v804
        %v806 = vpop.f32.mrf.mxu0
        %v807 = vadd.f32 %v650, %v806
        %808 = vmatmul.bf16.gmra.mxu0 %v629
        %v809 = vpop.f32.mrf.mxu0
        %v810 = vadd.f32 %v650, %v809
        %v811 = vpop.f32.mrf.mxu0
        %v812 = vadd.f32 %v650, %v811
        %813 = vmatmul.bf16.gmra.mxu0 %v630
        %v814 = vpop.f32.mrf.mxu0
        %v815 = vadd.f32 %v650, %v814
        %v816 = vpop.f32.mrf.mxu0
        %v817 = vadd.f32 %v650, %v816
        %818 = vmatmul.bf16.gmra.mxu0 %v631
        %v819 = vpop.f32.mrf.mxu0
        %v820 = vadd.f32 %v650, %v819
        %v821 = vpop.f32.mrf.mxu0
        %v822 = vadd.f32 %v650, %v821
        %823 = vmatmul.bf16.gmra.mxu0 %v632
        %v824 = vpop.f32.mrf.mxu0
        %v825 = vadd.f32 %v650, %v824
        %v826 = vpop.f32.mrf.mxu0
        %v827 = vadd.f32 %v650, %v826
        %828 = vdwg.mxu0
        %v829 = vmax.f32 %v741, 0.0
        %v830 = vmax.f32 %v790, 0.0
        %v831 = vmax.f32 %v743, 0.0
        %v832 = vmax.f32 %v792, 0.0
        %v833 = vmax.f32 %v746, 0.0
        %v834 = vmax.f32 %v795, 0.0
        %v835 = vmax.f32 %v748, 0.0
        %v836 = vmax.f32 %v797, 0.0
        %v837 = vmax.f32 %v751, 0.0
        %v838 = vmax.f32 %v800, 0.0
        %v839 = vmax.f32 %v753, 0.0
        %v840 = vmax.f32 %v802, 0.0
        %v841 = vmax.f32 %v756, 0.0
        %v842 = vmax.f32 %v805, 0.0
        %v843 = vmax.f32 %v758, 0.0
        %v844 = vmax.f32 %v807, 0.0
        %v845 = vmax.f32 %v761, 0.0
        %v846 = vmax.f32 %v810, 0.0
        %v847 = vmax.f32 %v763, 0.0
        %v848 = vmax.f32 %v812, 0.0
        %v849 = vmax.f32 %v766, 0.0
        %v850 = vmax.f32 %v815, 0.0
        %v851 = vmax.f32 %v768, 0.0
        %v852 = vmax.f32 %v817, 0.0
        %v853 = vmax.f32 %v771, 0.0
        %v854 = vmax.f32 %v820, 0.0
        %v855 = vmax.f32 %v773, 0.0
        %v856 = vmax.f32 %v822, 0.0
        %v857 = vmax.f32 %v776, 0.0
        %v858 = vmax.f32 %v825, 0.0
        %v859 = vmax.f32 %v778, 0.0
        %v860 = vmax.f32 %v827, 0.0
        %v861 = vpack.c.bf16 %v831, %v829
        %v862 = vpack.c.bf16 %v832, %v830
        %v863 = vpack.c.bf16 %v835, %v833
        %v864 = vpack.c.bf16 %v836, %v834
        %v865 = vpack.c.bf16 %v839, %v837
        %v866 = vpack.c.bf16 %v840, %v838
        %v867 = vpack.c.bf16 %v843, %v841
        %v868 = vpack.c.bf16 %v844, %v842
        %v869 = vpack.c.bf16 %v847, %v845
        %v870 = vpack.c.bf16 %v848, %v846
        %v871 = vpack.c.bf16 %v851, %v849
        %v872 = vpack.c.bf16 %v852, %v850
        %v873 = vpack.c.bf16 %v855, %v853
        %v874 = vpack.c.bf16 %v856, %v854
        %v875 = vpack.c.bf16 %v859, %v857
        %v876 = vpack.c.bf16 %v860, %v858
        %v877 = vld [vmem:[#allocation10] sm:$0xff]
        %v878 = vld [vmem:[#allocation10 + $0x8] sm:$0xff]
        %v879 = vld [vmem:[#allocation10 + $0x10] sm:$0xff]
        %v880 = vld [vmem:[#allocation10 + $0x18] sm:$0xff]
        %v881 = vld [vmem:[#allocation10 + $0x20] sm:$0xff]
        %v882 = vld [vmem:[#allocation10 + $0x28] sm:$0xff]
        %v883 = vld [vmem:[#allocation10 + $0x30] sm:$0xff]
        %v884 = vld [vmem:[#allocation10 + $0x38] sm:$0xff]
        %v885 = vld [vmem:[#allocation10 + $0x40] sm:$0xff]
        %v886 = vld [vmem:[#allocation10 + $0x48] sm:$0xff]
        %v887 = vld [vmem:[#allocation10 + $0x50] sm:$0xff]
        %v888 = vld [vmem:[#allocation10 + $0x58] sm:$0xff]
        %v889 = vld [vmem:[#allocation10 + $0x60] sm:$0xff]
        %v890 = vld [vmem:[#allocation10 + $0x68] sm:$0xff]
        %v891 = vld [vmem:[#allocation10 + $0x70] sm:$0xff]
        %v892 = vld [vmem:[#allocation10 + $0x78] sm:$0xff]
        %v893 = vld [vmem:[#allocation10 + $0x80] sm:$0xff]
        %v894 = vld [vmem:[#allocation10 + $0x88] sm:$0xff]
        %v895 = vld [vmem:[#allocation10 + $0x90] sm:$0xff]
        %v896 = vld [vmem:[#allocation10 + $0x98] sm:$0xff]
        %v897 = vld [vmem:[#allocation10 + $0xa0] sm:$0xff]
        %v898 = vld [vmem:[#allocation10 + $0xa8] sm:$0xff]
        %v899 = vld [vmem:[#allocation10 + $0xb0] sm:$0xff]
        %v900 = vld [vmem:[#allocation10 + $0xb8] sm:$0xff]
        %v901 = vld [vmem:[#allocation10 + $0xc0] sm:$0xff]
        %v902 = vld [vmem:[#allocation10 + $0xc8] sm:$0xff]
        %v903 = vld [vmem:[#allocation10 + $0xd0] sm:$0xff]
        %v904 = vld [vmem:[#allocation10 + $0xd8] sm:$0xff]
        %v905 = vld [vmem:[#allocation10 + $0xe0] sm:$0xff]
        %v906 = vld [vmem:[#allocation10 + $0xe8] sm:$0xff]
        %v907 = vld [vmem:[#allocation10 + $0xf0] sm:$0xff]
        %v908 = vld [vmem:[#allocation10 + $0xf8] sm:$0xff]
        %v941 = vunpack.c.l.b16 %v877
        %v942 = vunpack.c.h.b16 %v877
        %v943 = vunpack.c.l.b16 %v878
        %v944 = vunpack.c.h.b16 %v878
        %v945 = vunpack.c.l.b16 %v879
        %v946 = vunpack.c.h.b16 %v879
        %v947 = vunpack.c.l.b16 %v880
        %v948 = vunpack.c.h.b16 %v880
        %v949 = vunpack.c.l.b16 %v881
        %v950 = vunpack.c.h.b16 %v881
        %v951 = vunpack.c.l.b16 %v882
        %v952 = vunpack.c.h.b16 %v882
        %v953 = vunpack.c.l.b16 %v883
        %v954 = vunpack.c.h.b16 %v883
        %v955 = vunpack.c.l.b16 %v884
        %v956 = vunpack.c.h.b16 %v884
        %v957 = vunpack.c.l.b16 %v885
        %v958 = vunpack.c.h.b16 %v885
        %v959 = vunpack.c.l.b16 %v886
        %v960 = vunpack.c.h.b16 %v886
        %v961 = vunpack.c.l.b16 %v887
        %v962 = vunpack.c.h.b16 %v887
        %v963 = vunpack.c.l.b16 %v888
        %v964 = vunpack.c.h.b16 %v888
        %v965 = vunpack.c.l.b16 %v889
        %v966 = vunpack.c.h.b16 %v889
        %v967 = vunpack.c.l.b16 %v890
        %v968 = vunpack.c.h.b16 %v890
        %v969 = vunpack.c.l.b16 %v891
        %v970 = vunpack.c.h.b16 %v891
        %v971 = vunpack.c.l.b16 %v892
        %v972 = vunpack.c.h.b16 %v892
        %v973 = vunpack.c.l.b16 %v893
        %v974 = vunpack.c.h.b16 %v893
        %v975 = vunpack.c.l.b16 %v894
        %v976 = vunpack.c.h.b16 %v894
        %v977 = vunpack.c.l.b16 %v895
        %v978 = vunpack.c.h.b16 %v895
        %v979 = vunpack.c.l.b16 %v896
        %v980 = vunpack.c.h.b16 %v896
        %v981 = vunpack.c.l.b16 %v897
        %v982 = vunpack.c.h.b16 %v897
        %v983 = vunpack.c.l.b16 %v898
        %v984 = vunpack.c.h.b16 %v898
        %v985 = vunpack.c.l.b16 %v899
        %v986 = vunpack.c.h.b16 %v899
        %v987 = vunpack.c.l.b16 %v900
        %v988 = vunpack.c.h.b16 %v900
        %v989 = vunpack.c.l.b16 %v901
        %v990 = vunpack.c.h.b16 %v901
        %v991 = vunpack.c.l.b16 %v902
        %v992 = vunpack.c.h.b16 %v902
        %v993 = vunpack.c.l.b16 %v903
        %v994 = vunpack.c.h.b16 %v903
        %v995 = vunpack.c.l.b16 %v904
        %v996 = vunpack.c.h.b16 %v904
        %v997 = vunpack.c.l.b16 %v905
        %v998 = vunpack.c.h.b16 %v905
        %v999 = vunpack.c.l.b16 %v906
        %v1000 = vunpack.c.h.b16 %v906
        %v1001 = vunpack.c.l.b16 %v907
        %v1002 = vunpack.c.h.b16 %v907
        %v1003 = vunpack.c.l.b16 %v908
        %v1004 = vunpack.c.h.b16 %v908
        %v1005 = vpack.c.b16 %v943, %v941
        %v1006 = vpack.c.b16 %v944, %v942
        %v1007 = vpack.c.b16 %v947, %v945
        %v1008 = vpack.c.b16 %v948, %v946
        %v1009 = vpack.c.b16 %v951, %v949
        %v1010 = vpack.c.b16 %v952, %v950
        %v1011 = vpack.c.b16 %v955, %v953
        %v1012 = vpack.c.b16 %v956, %v954
        %v1013 = vpack.c.b16 %v959, %v957
        %v1014 = vpack.c.b16 %v960, %v958
        %v1015 = vpack.c.b16 %v963, %v961
        %v1016 = vpack.c.b16 %v964, %v962
        %v1017 = vpack.c.b16 %v967, %v965
        %v1018 = vpack.c.b16 %v968, %v966
        %v1019 = vpack.c.b16 %v971, %v969
        %v1020 = vpack.c.b16 %v972, %v970
        %v1021 = vpack.c.b16 %v975, %v973
        %v1022 = vpack.c.b16 %v976, %v974
        %v1023 = vpack.c.b16 %v979, %v977
        %v1024 = vpack.c.b16 %v980, %v978
        %v1025 = vpack.c.b16 %v983, %v981
        %v1026 = vpack.c.b16 %v984, %v982
        %v1027 = vpack.c.b16 %v987, %v985
        %v1028 = vpack.c.b16 %v988, %v986
        %v1029 = vpack.c.b16 %v991, %v989
        %v1030 = vpack.c.b16 %v992, %v990
        %v1031 = vpack.c.b16 %v995, %v993
        %v1032 = vpack.c.b16 %v996, %v994
        %v1033 = vpack.c.b16 %v999, %v997
        %v1034 = vpack.c.b16 %v1000, %v998
        %v1035 = vpack.c.b16 %v1003, %v1001
        %v1036 = vpack.c.b16 %v1004, %v1002
        %1069 = vmatpush.bf16.msra.mxu0 %v1019
        %1070 = vmatpush.bf16.msra.mxu0 %v1017
        %1071 = vmatpush.bf16.msra.mxu0 %v1015
        %1072 = vmatpush.bf16.msra.mxu0 %v1013
        %1073 = vmatpush.bf16.msra.mxu0 %v1011
        %1074 = vmatpush.bf16.msra.mxu0 %v1009
        %1075 = vmatpush.bf16.msra.mxu0 %v1007
        %1076 = vmatpush.bf16.msra.mxu0 %v1005
        %1077 = vmatmul.bf16.gmra.mxu0 %v861
        %v1078 = vpop.f32.mrf.mxu0
        %v1079 = vadd.f32 0.0, %v1078
        %v1080 = vpop.f32.mrf.mxu0
        %v1081 = vadd.f32 0.0, %v1080
        %1082 = vmatmul.bf16.gmra.mxu0 %v863
        %v1083 = vpop.f32.mrf.mxu0
        %v1084 = vadd.f32 0.0, %v1083
        %v1085 = vpop.f32.mrf.mxu0
        %v1086 = vadd.f32 0.0, %v1085
        %1087 = vmatmul.bf16.gmra.mxu0 %v865
        %v1088 = vpop.f32.mrf.mxu0
        %v1089 = vadd.f32 0.0, %v1088
        %v1090 = vpop.f32.mrf.mxu0
        %v1091 = vadd.f32 0.0, %v1090
        %1092 = vmatmul.bf16.gmra.mxu0 %v867
        %v1093 = vpop.f32.mrf.mxu0
        %v1094 = vadd.f32 0.0, %v1093
        %v1095 = vpop.f32.mrf.mxu0
        %v1096 = vadd.f32 0.0, %v1095
        %1097 = vmatmul.bf16.gmra.mxu0 %v869
        %v1098 = vpop.f32.mrf.mxu0
        %v1099 = vadd.f32 0.0, %v1098
        %v1100 = vpop.f32.mrf.mxu0
        %v1101 = vadd.f32 0.0, %v1100
        %1102 = vmatmul.bf16.gmra.mxu0 %v871
        %v1103 = vpop.f32.mrf.mxu0
        %v1104 = vadd.f32 0.0, %v1103
        %v1105 = vpop.f32.mrf.mxu0
        %v1106 = vadd.f32 0.0, %v1105
        %1107 = vmatmul.bf16.gmra.mxu0 %v873
        %v1108 = vpop.f32.mrf.mxu0
        %v1109 = vadd.f32 0.0, %v1108
        %v1110 = vpop.f32.mrf.mxu0
        %v1111 = vadd.f32 0.0, %v1110
        %1112 = vmatmul.bf16.gmra.mxu0 %v875
        %v1113 = vpop.f32.mrf.mxu0
        %v1114 = vadd.f32 0.0, %v1113
        %v1115 = vpop.f32.mrf.mxu0
        %v1116 = vadd.f32 0.0, %v1115
        %1117 = vdwg.mxu0
        %1118 = vmatpush.bf16.msra.mxu0 %v1035
        %1119 = vmatpush.bf16.msra.mxu0 %v1033
        %1120 = vmatpush.bf16.msra.mxu0 %v1031
        %1121 = vmatpush.bf16.msra.mxu0 %v1029
        %1122 = vmatpush.bf16.msra.mxu0 %v1027
        %1123 = vmatpush.bf16.msra.mxu0 %v1025
        %1124 = vmatpush.bf16.msra.mxu0 %v1023
        %1125 = vmatpush.bf16.msra.mxu0 %v1021
        %1126 = vmatmul.bf16.gmra.mxu0 %v862
        %v1127 = vpop.f32.mrf.mxu0
        %v1128 = vadd.f32 %v1079, %v1127
        %v1129 = vpop.f32.mrf.mxu0
        %v1130 = vadd.f32 %v1081, %v1129
        %1131 = vmatmul.bf16.gmra.mxu0 %v864
        %v1132 = vpop.f32.mrf.mxu0
        %v1133 = vadd.f32 %v1084, %v1132
        %v1134 = vpop.f32.mrf.mxu0
        %v1135 = vadd.f32 %v1086, %v1134
        %1136 = vmatmul.bf16.gmra.mxu0 %v866
        %v1137 = vpop.f32.mrf.mxu0
        %v1138 = vadd.f32 %v1089, %v1137
        %v1139 = vpop.f32.mrf.mxu0
        %v1140 = vadd.f32 %v1091, %v1139
        %1141 = vmatmul.bf16.gmra.mxu0 %v868
        %v1142 = vpop.f32.mrf.mxu0
        %v1143 = vadd.f32 %v1094, %v1142
        %v1144 = vpop.f32.mrf.mxu0
        %v1145 = vadd.f32 %v1096, %v1144
        %1146 = vmatmul.bf16.gmra.mxu0 %v870
        %v1147 = vpop.f32.mrf.mxu0
        %v1148 = vadd.f32 %v1099, %v1147
        %v1149 = vpop.f32.mrf.mxu0
        %v1150 = vadd.f32 %v1101, %v1149
        %1151 = vmatmul.bf16.gmra.mxu0 %v872
        %v1152 = vpop.f32.mrf.mxu0
        %v1153 = vadd.f32 %v1104, %v1152
        %v1154 = vpop.f32.mrf.mxu0
        %v1155 = vadd.f32 %v1106, %v1154
        %1156 = vmatmul.bf16.gmra.mxu0 %v874
        %v1157 = vpop.f32.mrf.mxu0
        %v1158 = vadd.f32 %v1109, %v1157
        %v1159 = vpop.f32.mrf.mxu0
        %v1160 = vadd.f32 %v1111, %v1159
        %1161 = vmatmul.bf16.gmra.mxu0 %v876
        %v1162 = vpop.f32.mrf.mxu0
        %v1163 = vadd.f32 %v1114, %v1162
        %v1164 = vpop.f32.mrf.mxu0
        %v1165 = vadd.f32 %v1116, %v1164
        %1166 = vdwg.mxu0
        %1167 = vmatpush.bf16.msra.mxu0 %v1020
        %1168 = vmatpush.bf16.msra.mxu0 %v1018
        %1169 = vmatpush.bf16.msra.mxu0 %v1016
        %1170 = vmatpush.bf16.msra.mxu0 %v1014
        %1171 = vmatpush.bf16.msra.mxu0 %v1012
        %1172 = vmatpush.bf16.msra.mxu0 %v1010
        %1173 = vmatpush.bf16.msra.mxu0 %v1008
        %1174 = vmatpush.bf16.msra.mxu0 %v1006
        %1175 = vmatmul.bf16.gmra.mxu0 %v861
        %v1176 = vpop.f32.mrf.mxu0
        %v1177 = vadd.f32 0.0, %v1176
        %v1178 = vpop.f32.mrf.mxu0
        %v1179 = vadd.f32 0.0, %v1178
        %1180 = vmatmul.bf16.gmra.mxu0 %v863
        %v1181 = vpop.f32.mrf.mxu0
        %v1182 = vadd.f32 0.0, %v1181
        %v1183 = vpop.f32.mrf.mxu0
        %v1184 = vadd.f32 0.0, %v1183
        %1185 = vmatmul.bf16.gmra.mxu0 %v865
        %v1186 = vpop.f32.mrf.mxu0
        %v1187 = vadd.f32 0.0, %v1186
        %v1188 = vpop.f32.mrf.mxu0
        %v1189 = vadd.f32 0.0, %v1188
        %1190 = vmatmul.bf16.gmra.mxu0 %v867
        %v1191 = vpop.f32.mrf.mxu0
        %v1192 = vadd.f32 0.0, %v1191
        %v1193 = vpop.f32.mrf.mxu0
        %v1194 = vadd.f32 0.0, %v1193
        %1195 = vmatmul.bf16.gmra.mxu0 %v869
        %v1196 = vpop.f32.mrf.mxu0
        %v1197 = vadd.f32 0.0, %v1196
        %v1198 = vpop.f32.mrf.mxu0
        %v1199 = vadd.f32 0.0, %v1198
        %1200 = vmatmul.bf16.gmra.mxu0 %v871
        %v1201 = vpop.f32.mrf.mxu0
        %v1202 = vadd.f32 0.0, %v1201
        %v1203 = vpop.f32.mrf.mxu0
        %v1204 = vadd.f32 0.0, %v1203
        %1205 = vmatmul.bf16.gmra.mxu0 %v873
        %v1206 = vpop.f32.mrf.mxu0
        %v1207 = vadd.f32 0.0, %v1206
        %v1208 = vpop.f32.mrf.mxu0
        %v1209 = vadd.f32 0.0, %v1208
        %1210 = vmatmul.bf16.gmra.mxu0 %v875
        %v1211 = vpop.f32.mrf.mxu0
        %v1212 = vadd.f32 0.0, %v1211
        %v1213 = vpop.f32.mrf.mxu0
        %v1214 = vadd.f32 0.0, %v1213
        %1215 = vdwg.mxu0
        %1216 = vmatpush.bf16.msra.mxu0 %v1036
        %1217 = vmatpush.bf16.msra.mxu0 %v1034
        %1218 = vmatpush.bf16.msra.mxu0 %v1032
        %1219 = vmatpush.bf16.msra.mxu0 %v1030
        %1220 = vmatpush.bf16.msra.mxu0 %v1028
        %1221 = vmatpush.bf16.msra.mxu0 %v1026
        %1222 = vmatpush.bf16.msra.mxu0 %v1024
        %1223 = vmatpush.bf16.msra.mxu0 %v1022
        %1224 = vmatmul.bf16.gmra.mxu0 %v862
        %v1225 = vpop.f32.mrf.mxu0
        %v1226 = vadd.f32 %v1177, %v1225
        %v1227 = vpop.f32.mrf.mxu0
        %v1228 = vadd.f32 %v1179, %v1227
        %1229 = vmatmul.bf16.gmra.mxu0 %v864
        %v1230 = vpop.f32.mrf.mxu0
        %v1231 = vadd.f32 %v1182, %v1230
        %v1232 = vpop.f32.mrf.mxu0
        %v1233 = vadd.f32 %v1184, %v1232
        %1234 = vmatmul.bf16.gmra.mxu0 %v866
        %v1235 = vpop.f32.mrf.mxu0
        %v1236 = vadd.f32 %v1187, %v1235
        %v1237 = vpop.f32.mrf.mxu0
        %v1238 = vadd.f32 %v1189, %v1237
        %1239 = vmatmul.bf16.gmra.mxu0 %v868
        %v1240 = vpop.f32.mrf.mxu0
        %v1241 = vadd.f32 %v1192, %v1240
        %v1242 = vpop.f32.mrf.mxu0
        %v1243 = vadd.f32 %v1194, %v1242
        %1244 = vmatmul.bf16.gmra.mxu0 %v870
        %v1245 = vpop.f32.mrf.mxu0
        %v1246 = vadd.f32 %v1197, %v1245
        %v1247 = vpop.f32.mrf.mxu0
        %v1248 = vadd.f32 %v1199, %v1247
        %1249 = vmatmul.bf16.gmra.mxu0 %v872
        %v1250 = vpop.f32.mrf.mxu0
        %v1251 = vadd.f32 %v1202, %v1250
        %v1252 = vpop.f32.mrf.mxu0
        %v1253 = vadd.f32 %v1204, %v1252
        %1254 = vmatmul.bf16.gmra.mxu0 %v874
        %v1255 = vpop.f32.mrf.mxu0
        %v1256 = vadd.f32 %v1207, %v1255
        %v1257 = vpop.f32.mrf.mxu0
        %v1258 = vadd.f32 %v1209, %v1257
        %1259 = vmatmul.bf16.gmra.mxu0 %v876
        %v1260 = vpop.f32.mrf.mxu0
        %v1261 = vadd.f32 %v1212, %v1260
        %v1262 = vpop.f32.mrf.mxu0
        %v1263 = vadd.f32 %v1214, %v1262
        %1264 = vdwg.mxu0
        %v1265 = vpack.c.bf16 %v1130, %v1128
        %v1266 = vpack.c.bf16 %v1228, %v1226
        %v1267 = vpack.c.bf16 %v1135, %v1133
        %v1268 = vpack.c.bf16 %v1233, %v1231
        %v1269 = vpack.c.bf16 %v1140, %v1138
        %v1270 = vpack.c.bf16 %v1238, %v1236
        %v1271 = vpack.c.bf16 %v1145, %v1143
        %v1272 = vpack.c.bf16 %v1243, %v1241
        %v1273 = vpack.c.bf16 %v1150, %v1148
        %v1274 = vpack.c.bf16 %v1248, %v1246
        %v1275 = vpack.c.bf16 %v1155, %v1153
        %v1276 = vpack.c.bf16 %v1253, %v1251
        %v1277 = vpack.c.bf16 %v1160, %v1158
        %v1278 = vpack.c.bf16 %v1258, %v1256
        %v1279 = vpack.c.bf16 %v1165, %v1163
        %v1280 = vpack.c.bf16 %v1263, %v1261
        %v1281 = vperm.slane %v478, 1
        %v1282 = vperm.slane %v479, 1
        %1283 = vmatpush.bf16.msra.mxu0 %v1279
        %1284 = vmatpush.bf16.msra.mxu0 %v1277
        %1285 = vmatpush.bf16.msra.mxu0 %v1275
        %1286 = vmatpush.bf16.msra.mxu0 %v1273
        %1287 = vmatpush.bf16.msra.mxu0 %v1271
        %1288 = vmatpush.bf16.msra.mxu0 %v1269
        %1289 = vmatpush.bf16.msra.mxu0 %v1267
        %1290 = vmatpush.bf16.msra.mxu0 %v1265
        %1291 = vmatmul.bf16.gmra.mxu0 %v512
        %v1292 = vpop.f32.mrf.mxu0
        %v1293 = vadd.f32 %v1281, %v1292
        %v1294 = vpop.f32.mrf.mxu0
        %v1295 = vadd.f32 %v1281, %v1294
        %1296 = vmatmul.bf16.gmra.mxu0 %v513
        %v1297 = vpop.f32.mrf.mxu0
        %v1298 = vadd.f32 %v1281, %v1297
        %v1299 = vpop.f32.mrf.mxu0
        %v1300 = vadd.f32 %v1281, %v1299
        %1301 = vmatmul.bf16.gmra.mxu0 %v514
        %v1302 = vpop.f32.mrf.mxu0
        %v1303 = vadd.f32 %v1281, %v1302
        %v1304 = vpop.f32.mrf.mxu0
        %v1305 = vadd.f32 %v1281, %v1304
        %1306 = vmatmul.bf16.gmra.mxu0 %v515
        %v1307 = vpop.f32.mrf.mxu0
        %v1308 = vadd.f32 %v1281, %v1307
        %v1309 = vpop.f32.mrf.mxu0
        %v1310 = vadd.f32 %v1281, %v1309
        %1311 = vmatmul.bf16.gmra.mxu0 %v516
        %v1312 = vpop.f32.mrf.mxu0
        %v1313 = vadd.f32 %v1281, %v1312
        %v1314 = vpop.f32.mrf.mxu0
        %v1315 = vadd.f32 %v1281, %v1314
        %1316 = vmatmul.bf16.gmra.mxu0 %v517
        %v1317 = vpop.f32.mrf.mxu0
        %v1318 = vadd.f32 %v1281, %v1317
        %v1319 = vpop.f32.mrf.mxu0
        %v1320 = vadd.f32 %v1281, %v1319
        %1321 = vmatmul.bf16.gmra.mxu0 %v518
        %v1322 = vpop.f32.mrf.mxu0
        %v1323 = vadd.f32 %v1281, %v1322
        %v1324 = vpop.f32.mrf.mxu0
        %v1325 = vadd.f32 %v1281, %v1324
        %1326 = vmatmul.bf16.gmra.mxu0 %v519
        %v1327 = vpop.f32.mrf.mxu0
        %v1328 = vadd.f32 %v1281, %v1327
        %v1329 = vpop.f32.mrf.mxu0
        %v1330 = vadd.f32 %v1281, %v1329
        %1331 = vdwg.mxu0
        %1332 = vmatpush.bf16.msra.mxu0 %v1280
        %1333 = vmatpush.bf16.msra.mxu0 %v1278
        %1334 = vmatpush.bf16.msra.mxu0 %v1276
        %1335 = vmatpush.bf16.msra.mxu0 %v1274
        %1336 = vmatpush.bf16.msra.mxu0 %v1272
        %1337 = vmatpush.bf16.msra.mxu0 %v1270
        %1338 = vmatpush.bf16.msra.mxu0 %v1268
        %1339 = vmatpush.bf16.msra.mxu0 %v1266
        %1340 = vmatmul.bf16.gmra.mxu0 %v512
        %v1341 = vpop.f32.mrf.mxu0
        %v1342 = vadd.f32 %v1282, %v1341
        %v1343 = vpop.f32.mrf.mxu0
        %v1344 = vadd.f32 %v1282, %v1343
        %1345 = vmatmul.bf16.gmra.mxu0 %v513
        %v1346 = vpop.f32.mrf.mxu0
        %v1347 = vadd.f32 %v1282, %v1346
        %v1348 = vpop.f32.mrf.mxu0
        %v1349 = vadd.f32 %v1282, %v1348
        %1350 = vmatmul.bf16.gmra.mxu0 %v514
        %v1351 = vpop.f32.mrf.mxu0
        %v1352 = vadd.f32 %v1282, %v1351
        %v1353 = vpop.f32.mrf.mxu0
        %v1354 = vadd.f32 %v1282, %v1353
        %1355 = vmatmul.bf16.gmra.mxu0 %v515
        %v1356 = vpop.f32.mrf.mxu0
        %v1357 = vadd.f32 %v1282, %v1356
        %v1358 = vpop.f32.mrf.mxu0
        %v1359 = vadd.f32 %v1282, %v1358
        %1360 = vmatmul.bf16.gmra.mxu0 %v516
        %v1361 = vpop.f32.mrf.mxu0
        %v1362 = vadd.f32 %v1282, %v1361
        %v1363 = vpop.f32.mrf.mxu0
        %v1364 = vadd.f32 %v1282, %v1363
        %1365 = vmatmul.bf16.gmra.mxu0 %v517
        %v1366 = vpop.f32.mrf.mxu0
        %v1367 = vadd.f32 %v1282, %v1366
        %v1368 = vpop.f32.mrf.mxu0
        %v1369 = vadd.f32 %v1282, %v1368
        %1370 = vmatmul.bf16.gmra.mxu0 %v518
        %v1371 = vpop.f32.mrf.mxu0
        %v1372 = vadd.f32 %v1282, %v1371
        %v1373 = vpop.f32.mrf.mxu0
        %v1374 = vadd.f32 %v1282, %v1373
        %1375 = vmatmul.bf16.gmra.mxu0 %v519
        %v1376 = vpop.f32.mrf.mxu0
        %v1377 = vadd.f32 %v1282, %v1376
        %v1378 = vpop.f32.mrf.mxu0
        %v1379 = vadd.f32 %v1282, %v1378
        %1380 = vdwg.mxu0
        %v1381 = vmax.f32 %v1293, 0.0
        %v1382 = vmax.f32 %v1342, 0.0
        %v1383 = vmax.f32 %v1295, 0.0
        %v1384 = vmax.f32 %v1344, 0.0
        %v1385 = vmax.f32 %v1298, 0.0
        %v1386 = vmax.f32 %v1347, 0.0
        %v1387 = vmax.f32 %v1300, 0.0
        %v1388 = vmax.f32 %v1349, 0.0
        %v1389 = vmax.f32 %v1303, 0.0
        %v1390 = vmax.f32 %v1352, 0.0
        %v1391 = vmax.f32 %v1305, 0.0
        %v1392 = vmax.f32 %v1354, 0.0
        %v1393 = vmax.f32 %v1308, 0.0
        %v1394 = vmax.f32 %v1357, 0.0
        %v1395 = vmax.f32 %v1310, 0.0
        %v1396 = vmax.f32 %v1359, 0.0
        %v1397 = vmax.f32 %v1313, 0.0
        %v1398 = vmax.f32 %v1362, 0.0
        %v1399 = vmax.f32 %v1315, 0.0
        %v1400 = vmax.f32 %v1364, 0.0
        %v1401 = vmax.f32 %v1318, 0.0
        %v1402 = vmax.f32 %v1367, 0.0
        %v1403 = vmax.f32 %v1320, 0.0
        %v1404 = vmax.f32 %v1369, 0.0
        %v1405 = vmax.f32 %v1323, 0.0
        %v1406 = vmax.f32 %v1372, 0.0
        %v1407 = vmax.f32 %v1325, 0.0
        %v1408 = vmax.f32 %v1374, 0.0
        %v1409 = vmax.f32 %v1328, 0.0
        %v1410 = vmax.f32 %v1377, 0.0
        %v1411 = vmax.f32 %v1330, 0.0
        %v1412 = vmax.f32 %v1379, 0.0
        %v1413 = vpack.c.bf16 %v1383, %v1381
        %v1414 = vpack.c.bf16 %v1384, %v1382
        %v1415 = vpack.c.bf16 %v1387, %v1385
        %v1416 = vpack.c.bf16 %v1388, %v1386
        %v1417 = vpack.c.bf16 %v1391, %v1389
        %v1418 = vpack.c.bf16 %v1392, %v1390
        %v1419 = vpack.c.bf16 %v1395, %v1393
        %v1420 = vpack.c.bf16 %v1396, %v1394
        %v1421 = vpack.c.bf16 %v1399, %v1397
        %v1422 = vpack.c.bf16 %v1400, %v1398
        %v1423 = vpack.c.bf16 %v1403, %v1401
        %v1424 = vpack.c.bf16 %v1404, %v1402
        %v1425 = vpack.c.bf16 %v1407, %v1405
        %v1426 = vpack.c.bf16 %v1408, %v1406
        %v1427 = vpack.c.bf16 %v1411, %v1409
        %v1428 = vpack.c.bf16 %v1412, %v1410
        %s1429 = scalar_lea.vmem [#allocation10], 256
        %v1430 = vld [vmem:[%s1429] sm:$0xff]
        %v1431 = vld [vmem:[%s1429 + $0x8] sm:$0xff]
        %v1432 = vld [vmem:[%s1429 + $0x10] sm:$0xff]
        %v1433 = vld [vmem:[%s1429 + $0x18] sm:$0xff]
        %v1434 = vld [vmem:[%s1429 + $0x20] sm:$0xff]
        %v1435 = vld [vmem:[%s1429 + $0x28] sm:$0xff]
        %v1436 = vld [vmem:[%s1429 + $0x30] sm:$0xff]
        %v1437 = vld [vmem:[%s1429 + $0x38] sm:$0xff]
        %v1438 = vld [vmem:[%s1429 + $0x40] sm:$0xff]
        %v1439 = vld [vmem:[%s1429 + $0x48] sm:$0xff]
        %v1440 = vld [vmem:[%s1429 + $0x50] sm:$0xff]
        %v1441 = vld [vmem:[%s1429 + $0x58] sm:$0xff]
        %v1442 = vld [vmem:[%s1429 + $0x60] sm:$0xff]
        %v1443 = vld [vmem:[%s1429 + $0x68] sm:$0xff]
        %v1444 = vld [vmem:[%s1429 + $0x70] sm:$0xff]
        %v1445 = vld [vmem:[%s1429 + $0x78] sm:$0xff]
        %v1446 = vld [vmem:[%s1429 + $0x80] sm:$0xff]
        %v1447 = vld [vmem:[%s1429 + $0x88] sm:$0xff]
        %v1448 = vld [vmem:[%s1429 + $0x90] sm:$0xff]
        %v1449 = vld [vmem:[%s1429 + $0x98] sm:$0xff]
        %v1450 = vld [vmem:[%s1429 + $0xa0] sm:$0xff]
        %v1451 = vld [vmem:[%s1429 + $0xa8] sm:$0xff]
        %v1452 = vld [vmem:[%s1429 + $0xb0] sm:$0xff]
        %v1453 = vld [vmem:[%s1429 + $0xb8] sm:$0xff]
        %v1454 = vld [vmem:[%s1429 + $0xc0] sm:$0xff]
        %v1455 = vld [vmem:[%s1429 + $0xc8] sm:$0xff]
        %v1456 = vld [vmem:[%s1429 + $0xd0] sm:$0xff]
        %v1457 = vld [vmem:[%s1429 + $0xd8] sm:$0xff]
        %v1458 = vld [vmem:[%s1429 + $0xe0] sm:$0xff]
        %v1459 = vld [vmem:[%s1429 + $0xe8] sm:$0xff]
        %v1460 = vld [vmem:[%s1429 + $0xf0] sm:$0xff]
        %v1461 = vld [vmem:[%s1429 + $0xf8] sm:$0xff]
        %v1494 = vunpack.c.l.b16 %v1430
        %v1495 = vunpack.c.h.b16 %v1430
        %v1496 = vunpack.c.l.b16 %v1431
        %v1497 = vunpack.c.h.b16 %v1431
        %v1498 = vunpack.c.l.b16 %v1432
        %v1499 = vunpack.c.h.b16 %v1432
        %v1500 = vunpack.c.l.b16 %v1433
        %v1501 = vunpack.c.h.b16 %v1433
        %v1502 = vunpack.c.l.b16 %v1434
        %v1503 = vunpack.c.h.b16 %v1434
        %v1504 = vunpack.c.l.b16 %v1435
        %v1505 = vunpack.c.h.b16 %v1435
        %v1506 = vunpack.c.l.b16 %v1436
        %v1507 = vunpack.c.h.b16 %v1436
        %v1508 = vunpack.c.l.b16 %v1437
        %v1509 = vunpack.c.h.b16 %v1437
        %v1510 = vunpack.c.l.b16 %v1438
        %v1511 = vunpack.c.h.b16 %v1438
        %v1512 = vunpack.c.l.b16 %v1439
        %v1513 = vunpack.c.h.b16 %v1439
        %v1514 = vunpack.c.l.b16 %v1440
        %v1515 = vunpack.c.h.b16 %v1440
        %v1516 = vunpack.c.l.b16 %v1441
        %v1517 = vunpack.c.h.b16 %v1441
        %v1518 = vunpack.c.l.b16 %v1442
        %v1519 = vunpack.c.h.b16 %v1442
        %v1520 = vunpack.c.l.b16 %v1443
        %v1521 = vunpack.c.h.b16 %v1443
        %v1522 = vunpack.c.l.b16 %v1444
        %v1523 = vunpack.c.h.b16 %v1444
        %v1524 = vunpack.c.l.b16 %v1445
        %v1525 = vunpack.c.h.b16 %v1445
        %v1526 = vunpack.c.l.b16 %v1446
        %v1527 = vunpack.c.h.b16 %v1446
        %v1528 = vunpack.c.l.b16 %v1447
        %v1529 = vunpack.c.h.b16 %v1447
        %v1530 = vunpack.c.l.b16 %v1448
        %v1531 = vunpack.c.h.b16 %v1448
        %v1532 = vunpack.c.l.b16 %v1449
        %v1533 = vunpack.c.h.b16 %v1449
        %v1534 = vunpack.c.l.b16 %v1450
        %v1535 = vunpack.c.h.b16 %v1450
        %v1536 = vunpack.c.l.b16 %v1451
        %v1537 = vunpack.c.h.b16 %v1451
        %v1538 = vunpack.c.l.b16 %v1452
        %v1539 = vunpack.c.h.b16 %v1452
        %v1540 = vunpack.c.l.b16 %v1453
        %v1541 = vunpack.c.h.b16 %v1453
        %v1542 = vunpack.c.l.b16 %v1454
        %v1543 = vunpack.c.h.b16 %v1454
        %v1544 = vunpack.c.l.b16 %v1455
        %v1545 = vunpack.c.h.b16 %v1455
        %v1546 = vunpack.c.l.b16 %v1456
        %v1547 = vunpack.c.h.b16 %v1456
        %v1548 = vunpack.c.l.b16 %v1457
        %v1549 = vunpack.c.h.b16 %v1457
        %v1550 = vunpack.c.l.b16 %v1458
        %v1551 = vunpack.c.h.b16 %v1458
        %v1552 = vunpack.c.l.b16 %v1459
        %v1553 = vunpack.c.h.b16 %v1459
        %v1554 = vunpack.c.l.b16 %v1460
        %v1555 = vunpack.c.h.b16 %v1460
        %v1556 = vunpack.c.l.b16 %v1461
        %v1557 = vunpack.c.h.b16 %v1461
        %v1558 = vpack.c.b16 %v1496, %v1494
        %v1559 = vpack.c.b16 %v1497, %v1495
        %v1560 = vpack.c.b16 %v1500, %v1498
        %v1561 = vpack.c.b16 %v1501, %v1499
        %v1562 = vpack.c.b16 %v1504, %v1502
        %v1563 = vpack.c.b16 %v1505, %v1503
        %v1564 = vpack.c.b16 %v1508, %v1506
        %v1565 = vpack.c.b16 %v1509, %v1507
        %v1566 = vpack.c.b16 %v1512, %v1510
        %v1567 = vpack.c.b16 %v1513, %v1511
        %v1568 = vpack.c.b16 %v1516, %v1514
        %v1569 = vpack.c.b16 %v1517, %v1515
        %v1570 = vpack.c.b16 %v1520, %v1518
        %v1571 = vpack.c.b16 %v1521, %v1519
        %v1572 = vpack.c.b16 %v1524, %v1522
        %v1573 = vpack.c.b16 %v1525, %v1523
        %v1574 = vpack.c.b16 %v1528, %v1526
        %v1575 = vpack.c.b16 %v1529, %v1527
        %v1576 = vpack.c.b16 %v1532, %v1530
        %v1577 = vpack.c.b16 %v1533, %v1531
        %v1578 = vpack.c.b16 %v1536, %v1534
        %v1579 = vpack.c.b16 %v1537, %v1535
        %v1580 = vpack.c.b16 %v1540, %v1538
        %v1581 = vpack.c.b16 %v1541, %v1539
        %v1582 = vpack.c.b16 %v1544, %v1542
        %v1583 = vpack.c.b16 %v1545, %v1543
        %v1584 = vpack.c.b16 %v1548, %v1546
        %v1585 = vpack.c.b16 %v1549, %v1547
        %v1586 = vpack.c.b16 %v1552, %v1550
        %v1587 = vpack.c.b16 %v1553, %v1551
        %v1588 = vpack.c.b16 %v1556, %v1554
        %v1589 = vpack.c.b16 %v1557, %v1555
        %1622 = vmatpush.bf16.msra.mxu0 %v1572
        %1623 = vmatpush.bf16.msra.mxu0 %v1570
        %1624 = vmatpush.bf16.msra.mxu0 %v1568
        %1625 = vmatpush.bf16.msra.mxu0 %v1566
        %1626 = vmatpush.bf16.msra.mxu0 %v1564
        %1627 = vmatpush.bf16.msra.mxu0 %v1562
        %1628 = vmatpush.bf16.msra.mxu0 %v1560
        %1629 = vmatpush.bf16.msra.mxu0 %v1558
        %1630 = vmatmul.bf16.gmra.mxu0 %v1413
        %v1631 = vpop.f32.mrf.mxu0
        %v1632 = vadd.f32 0.0, %v1631
        %v1633 = vpop.f32.mrf.mxu0
        %v1634 = vadd.f32 0.0, %v1633
        %1635 = vmatmul.bf16.gmra.mxu0 %v1415
        %v1636 = vpop.f32.mrf.mxu0
        %v1637 = vadd.f32 0.0, %v1636
        %v1638 = vpop.f32.mrf.mxu0
        %v1639 = vadd.f32 0.0, %v1638
        %1640 = vmatmul.bf16.gmra.mxu0 %v1417
        %v1641 = vpop.f32.mrf.mxu0
        %v1642 = vadd.f32 0.0, %v1641
        %v1643 = vpop.f32.mrf.mxu0
        %v1644 = vadd.f32 0.0, %v1643
        %1645 = vmatmul.bf16.gmra.mxu0 %v1419
        %v1646 = vpop.f32.mrf.mxu0
        %v1647 = vadd.f32 0.0, %v1646
        %v1648 = vpop.f32.mrf.mxu0
        %v1649 = vadd.f32 0.0, %v1648
        %1650 = vmatmul.bf16.gmra.mxu0 %v1421
        %v1651 = vpop.f32.mrf.mxu0
        %v1652 = vadd.f32 0.0, %v1651
        %v1653 = vpop.f32.mrf.mxu0
        %v1654 = vadd.f32 0.0, %v1653
        %1655 = vmatmul.bf16.gmra.mxu0 %v1423
        %v1656 = vpop.f32.mrf.mxu0
        %v1657 = vadd.f32 0.0, %v1656
        %v1658 = vpop.f32.mrf.mxu0
        %v1659 = vadd.f32 0.0, %v1658
        %1660 = vmatmul.bf16.gmra.mxu0 %v1425
        %v1661 = vpop.f32.mrf.mxu0
        %v1662 = vadd.f32 0.0, %v1661
        %v1663 = vpop.f32.mrf.mxu0
        %v1664 = vadd.f32 0.0, %v1663
        %1665 = vmatmul.bf16.gmra.mxu0 %v1427
        %v1666 = vpop.f32.mrf.mxu0
        %v1667 = vadd.f32 0.0, %v1666
        %v1668 = vpop.f32.mrf.mxu0
        %v1669 = vadd.f32 0.0, %v1668
        %1670 = vdwg.mxu0
        %1671 = vmatpush.bf16.msra.mxu0 %v1588
        %1672 = vmatpush.bf16.msra.mxu0 %v1586
        %1673 = vmatpush.bf16.msra.mxu0 %v1584
        %1674 = vmatpush.bf16.msra.mxu0 %v1582
        %1675 = vmatpush.bf16.msra.mxu0 %v1580
        %1676 = vmatpush.bf16.msra.mxu0 %v1578
        %1677 = vmatpush.bf16.msra.mxu0 %v1576
        %1678 = vmatpush.bf16.msra.mxu0 %v1574
        %1679 = vmatmul.bf16.gmra.mxu0 %v1414
        %v1680 = vpop.f32.mrf.mxu0
        %v1681 = vadd.f32 %v1632, %v1680
        %v1682 = vpop.f32.mrf.mxu0
        %v1683 = vadd.f32 %v1634, %v1682
        %1684 = vmatmul.bf16.gmra.mxu0 %v1416
        %v1685 = vpop.f32.mrf.mxu0
        %v1686 = vadd.f32 %v1637, %v1685
        %v1687 = vpop.f32.mrf.mxu0
        %v1688 = vadd.f32 %v1639, %v1687
        %1689 = vmatmul.bf16.gmra.mxu0 %v1418
        %v1690 = vpop.f32.mrf.mxu0
        %v1691 = vadd.f32 %v1642, %v1690
        %v1692 = vpop.f32.mrf.mxu0
        %v1693 = vadd.f32 %v1644, %v1692
        %1694 = vmatmul.bf16.gmra.mxu0 %v1420
        %v1695 = vpop.f32.mrf.mxu0
        %v1696 = vadd.f32 %v1647, %v1695
        %v1697 = vpop.f32.mrf.mxu0
        %v1698 = vadd.f32 %v1649, %v1697
        %1699 = vmatmul.bf16.gmra.mxu0 %v1422
        %v1700 = vpop.f32.mrf.mxu0
        %v1701 = vadd.f32 %v1652, %v1700
        %v1702 = vpop.f32.mrf.mxu0
        %v1703 = vadd.f32 %v1654, %v1702
        %1704 = vmatmul.bf16.gmra.mxu0 %v1424
        %v1705 = vpop.f32.mrf.mxu0
        %v1706 = vadd.f32 %v1657, %v1705
        %v1707 = vpop.f32.mrf.mxu0
        %v1708 = vadd.f32 %v1659, %v1707
        %1709 = vmatmul.bf16.gmra.mxu0 %v1426
        %v1710 = vpop.f32.mrf.mxu0
        %v1711 = vadd.f32 %v1662, %v1710
        %v1712 = vpop.f32.mrf.mxu0
        %v1713 = vadd.f32 %v1664, %v1712
        %1714 = vmatmul.bf16.gmra.mxu0 %v1428
        %v1715 = vpop.f32.mrf.mxu0
        %v1716 = vadd.f32 %v1667, %v1715
        %v1717 = vpop.f32.mrf.mxu0
        %v1718 = vadd.f32 %v1669, %v1717
        %1719 = vdwg.mxu0
        %1720 = vmatpush.bf16.msra.mxu0 %v1573
        %1721 = vmatpush.bf16.msra.mxu0 %v1571
        %1722 = vmatpush.bf16.msra.mxu0 %v1569
        %1723 = vmatpush.bf16.msra.mxu0 %v1567
        %1724 = vmatpush.bf16.msra.mxu0 %v1565
        %1725 = vmatpush.bf16.msra.mxu0 %v1563
        %1726 = vmatpush.bf16.msra.mxu0 %v1561
        %1727 = vmatpush.bf16.msra.mxu0 %v1559
        %1728 = vmatmul.bf16.gmra.mxu0 %v1413
        %v1729 = vpop.f32.mrf.mxu0
        %v1730 = vadd.f32 0.0, %v1729
        %v1731 = vpop.f32.mrf.mxu0
        %v1732 = vadd.f32 0.0, %v1731
        %1733 = vmatmul.bf16.gmra.mxu0 %v1415
        %v1734 = vpop.f32.mrf.mxu0
        %v1735 = vadd.f32 0.0, %v1734
        %v1736 = vpop.f32.mrf.mxu0
        %v1737 = vadd.f32 0.0, %v1736
        %1738 = vmatmul.bf16.gmra.mxu0 %v1417
        %v1739 = vpop.f32.mrf.mxu0
        %v1740 = vadd.f32 0.0, %v1739
        %v1741 = vpop.f32.mrf.mxu0
        %v1742 = vadd.f32 0.0, %v1741
        %1743 = vmatmul.bf16.gmra.mxu0 %v1419
        %v1744 = vpop.f32.mrf.mxu0
        %v1745 = vadd.f32 0.0, %v1744
        %v1746 = vpop.f32.mrf.mxu0
        %v1747 = vadd.f32 0.0, %v1746
        %1748 = vmatmul.bf16.gmra.mxu0 %v1421
        %v1749 = vpop.f32.mrf.mxu0
        %v1750 = vadd.f32 0.0, %v1749
        %v1751 = vpop.f32.mrf.mxu0
        %v1752 = vadd.f32 0.0, %v1751
        %1753 = vmatmul.bf16.gmra.mxu0 %v1423
        %v1754 = vpop.f32.mrf.mxu0
        %v1755 = vadd.f32 0.0, %v1754
        %v1756 = vpop.f32.mrf.mxu0
        %v1757 = vadd.f32 0.0, %v1756
        %1758 = vmatmul.bf16.gmra.mxu0 %v1425
        %v1759 = vpop.f32.mrf.mxu0
        %v1760 = vadd.f32 0.0, %v1759
        %v1761 = vpop.f32.mrf.mxu0
        %v1762 = vadd.f32 0.0, %v1761
        %1763 = vmatmul.bf16.gmra.mxu0 %v1427
        %v1764 = vpop.f32.mrf.mxu0
        %v1765 = vadd.f32 0.0, %v1764
        %v1766 = vpop.f32.mrf.mxu0
        %v1767 = vadd.f32 0.0, %v1766
        %1768 = vdwg.mxu0
        %1769 = vmatpush.bf16.msra.mxu0 %v1589
        %1770 = vmatpush.bf16.msra.mxu0 %v1587
        %1771 = vmatpush.bf16.msra.mxu0 %v1585
        %1772 = vmatpush.bf16.msra.mxu0 %v1583
        %1773 = vmatpush.bf16.msra.mxu0 %v1581
        %1774 = vmatpush.bf16.msra.mxu0 %v1579
        %1775 = vmatpush.bf16.msra.mxu0 %v1577
        %1776 = vmatpush.bf16.msra.mxu0 %v1575
        %1777 = vmatmul.bf16.gmra.mxu0 %v1414
        %v1778 = vpop.f32.mrf.mxu0
        %v1779 = vadd.f32 %v1730, %v1778
        %v1780 = vpop.f32.mrf.mxu0
        %v1781 = vadd.f32 %v1732, %v1780
        %1782 = vmatmul.bf16.gmra.mxu0 %v1416
        %v1783 = vpop.f32.mrf.mxu0
        %v1784 = vadd.f32 %v1735, %v1783
        %v1785 = vpop.f32.mrf.mxu0
        %v1786 = vadd.f32 %v1737, %v1785
        %1787 = vmatmul.bf16.gmra.mxu0 %v1418
        %v1788 = vpop.f32.mrf.mxu0
        %v1789 = vadd.f32 %v1740, %v1788
        %v1790 = vpop.f32.mrf.mxu0
        %v1791 = vadd.f32 %v1742, %v1790
        %1792 = vmatmul.bf16.gmra.mxu0 %v1420
        %v1793 = vpop.f32.mrf.mxu0
        %v1794 = vadd.f32 %v1745, %v1793
        %v1795 = vpop.f32.mrf.mxu0
        %v1796 = vadd.f32 %v1747, %v1795
        %1797 = vmatmul.bf16.gmra.mxu0 %v1422
        %v1798 = vpop.f32.mrf.mxu0
        %v1799 = vadd.f32 %v1750, %v1798
        %v1800 = vpop.f32.mrf.mxu0
        %v1801 = vadd.f32 %v1752, %v1800
        %1802 = vmatmul.bf16.gmra.mxu0 %v1424
        %v1803 = vpop.f32.mrf.mxu0
        %v1804 = vadd.f32 %v1755, %v1803
        %v1805 = vpop.f32.mrf.mxu0
        %v1806 = vadd.f32 %v1757, %v1805
        %1807 = vmatmul.bf16.gmra.mxu0 %v1426
        %v1808 = vpop.f32.mrf.mxu0
        %v1809 = vadd.f32 %v1760, %v1808
        %v1810 = vpop.f32.mrf.mxu0
        %v1811 = vadd.f32 %v1762, %v1810
        %1812 = vmatmul.bf16.gmra.mxu0 %v1428
        %v1813 = vpop.f32.mrf.mxu0
        %v1814 = vadd.f32 %v1765, %v1813
        %v1815 = vpop.f32.mrf.mxu0
        %v1816 = vadd.f32 %v1767, %v1815
        %1817 = vdwg.mxu0
        %v1818 = vpack.c.bf16 %v1683, %v1681
        %v1819 = vpack.c.bf16 %v1781, %v1779
        %v1820 = vpack.c.bf16 %v1688, %v1686
        %v1821 = vpack.c.bf16 %v1786, %v1784
        %v1822 = vpack.c.bf16 %v1693, %v1691
        %v1823 = vpack.c.bf16 %v1791, %v1789
        %v1824 = vpack.c.bf16 %v1698, %v1696
        %v1825 = vpack.c.bf16 %v1796, %v1794
        %v1826 = vpack.c.bf16 %v1703, %v1701
        %v1827 = vpack.c.bf16 %v1801, %v1799
        %v1828 = vpack.c.bf16 %v1708, %v1706
        %v1829 = vpack.c.bf16 %v1806, %v1804
        %v1830 = vpack.c.bf16 %v1713, %v1711
        %v1831 = vpack.c.bf16 %v1811, %v1809
        %v1832 = vpack.c.bf16 %v1718, %v1716
        %v1833 = vpack.c.bf16 %v1816, %v1814
        %v1834 = vperm.slane %v478, 2
        %v1835 = vperm.slane %v479, 2
        %v1838 = vunpack.c.l.b16 %v476
        %v1839 = vunpack.c.l.b16 %v477
        %v1840 = vpack.c.b16 %v1839, %v1838
        %1842 = vmatpush.bf16.msra.mxu0 %v1832
        %1843 = vmatpush.bf16.msra.mxu0 %v1830
        %1844 = vmatpush.bf16.msra.mxu0 %v1828
        %1845 = vmatpush.bf16.msra.mxu0 %v1826
        %1846 = vmatpush.bf16.msra.mxu0 %v1824
        %1847 = vmatpush.bf16.msra.mxu0 %v1822
        %1848 = vmatpush.bf16.msra.mxu0 %v1820
        %1849 = vmatpush.bf16.msra.mxu0 %v1818
        %1850 = vmatmul.bf16.gmra.mxu0 %v1840
        %v1851 = vpop.f32.mrf.mxu0
        %v1852 = vadd.f32 %v1834, %v1851
        %v1853 = vpop.f32.mrf.mxu0
        %v1854 = vadd.f32 %v1834, %v1853
        %1855 = vdwg.mxu0
        %1856 = vmatpush.bf16.msra.mxu0 %v1833
        %1857 = vmatpush.bf16.msra.mxu0 %v1831
        %1858 = vmatpush.bf16.msra.mxu0 %v1829
        %1859 = vmatpush.bf16.msra.mxu0 %v1827
        %1860 = vmatpush.bf16.msra.mxu0 %v1825
        %1861 = vmatpush.bf16.msra.mxu0 %v1823
        %1862 = vmatpush.bf16.msra.mxu0 %v1821
        %1863 = vmatpush.bf16.msra.mxu0 %v1819
        %1864 = vmatmul.bf16.gmra.mxu0 %v1840
        %v1865 = vpop.f32.mrf.mxu0
        %v1866 = vadd.f32 %v1835, %v1865
        %v1867 = vpop.f32.mrf.mxu0
        %v1868 = vadd.f32 %v1835, %v1867
        %1869 = vdwg.mxu0
        %v1870 = vpack.c.bf16 %v1854, %v1852
        %v1871 = vpack.c.bf16 %v1868, %v1866
        %s1872 = scalar_lea.vmem [#allocation10], 512
        %v1873 = vld [vmem:[%s1872] sm:$0xff]
        %v1874 = vld [vmem:[%s1872 + $0x8] sm:$0xff]
        %v1875 = vld [vmem:[%s1872 + $0x10] sm:$0xff]
        %v1876 = vld [vmem:[%s1872 + $0x18] sm:$0xff]
        %v1877 = vld [vmem:[%s1872 + $0x20] sm:$0xff]
        %v1878 = vld [vmem:[%s1872 + $0x28] sm:$0xff]
        %v1879 = vld [vmem:[%s1872 + $0x30] sm:$0xff]
        %v1880 = vld [vmem:[%s1872 + $0x38] sm:$0xff]
        %v1881 = vld [vmem:[%s1872 + $0x40] sm:$0xff]
        %v1882 = vld [vmem:[%s1872 + $0x48] sm:$0xff]
        %v1883 = vld [vmem:[%s1872 + $0x50] sm:$0xff]
        %v1884 = vld [vmem:[%s1872 + $0x58] sm:$0xff]
        %v1885 = vld [vmem:[%s1872 + $0x60] sm:$0xff]
        %v1886 = vld [vmem:[%s1872 + $0x68] sm:$0xff]
        %v1887 = vld [vmem:[%s1872 + $0x70] sm:$0xff]
        %v1888 = vld [vmem:[%s1872 + $0x78] sm:$0xff]
        %v1889 = vld [vmem:[%s1872 + $0x80] sm:$0xff]
        %v1890 = vld [vmem:[%s1872 + $0x88] sm:$0xff]
        %v1891 = vld [vmem:[%s1872 + $0x90] sm:$0xff]
        %v1892 = vld [vmem:[%s1872 + $0x98] sm:$0xff]
        %v1893 = vld [vmem:[%s1872 + $0xa0] sm:$0xff]
        %v1894 = vld [vmem:[%s1872 + $0xa8] sm:$0xff]
        %v1895 = vld [vmem:[%s1872 + $0xb0] sm:$0xff]
        %v1896 = vld [vmem:[%s1872 + $0xb8] sm:$0xff]
        %v1897 = vld [vmem:[%s1872 + $0xc0] sm:$0xff]
        %v1898 = vld [vmem:[%s1872 + $0xc8] sm:$0xff]
        %v1899 = vld [vmem:[%s1872 + $0xd0] sm:$0xff]
        %v1900 = vld [vmem:[%s1872 + $0xd8] sm:$0xff]
        %v1901 = vld [vmem:[%s1872 + $0xe0] sm:$0xff]
        %v1902 = vld [vmem:[%s1872 + $0xe8] sm:$0xff]
        %v1903 = vld [vmem:[%s1872 + $0xf0] sm:$0xff]
        %v1904 = vld [vmem:[%s1872 + $0xf8] sm:$0xff]
        %v1905 = vperm.slane %v478, 3
        %v1906 = vperm.slane %v479, 3
        %v1939 = vunpack.c.l.b16 %v1873
        %v1940 = vunpack.c.h.b16 %v1873
        %v1941 = vunpack.c.l.b16 %v1874
        %v1942 = vunpack.c.h.b16 %v1874
        %v1943 = vunpack.c.l.b16 %v1875
        %v1944 = vunpack.c.h.b16 %v1875
        %v1945 = vunpack.c.l.b16 %v1876
        %v1946 = vunpack.c.h.b16 %v1876
        %v1947 = vunpack.c.l.b16 %v1877
        %v1948 = vunpack.c.h.b16 %v1877
        %v1949 = vunpack.c.l.b16 %v1878
        %v1950 = vunpack.c.h.b16 %v1878
        %v1951 = vunpack.c.l.b16 %v1879
        %v1952 = vunpack.c.h.b16 %v1879
        %v1953 = vunpack.c.l.b16 %v1880
        %v1954 = vunpack.c.h.b16 %v1880
        %v1955 = vunpack.c.l.b16 %v1881
        %v1956 = vunpack.c.h.b16 %v1881
        %v1957 = vunpack.c.l.b16 %v1882
        %v1958 = vunpack.c.h.b16 %v1882
        %v1959 = vunpack.c.l.b16 %v1883
        %v1960 = vunpack.c.h.b16 %v1883
        %v1961 = vunpack.c.l.b16 %v1884
        %v1962 = vunpack.c.h.b16 %v1884
        %v1963 = vunpack.c.l.b16 %v1885
        %v1964 = vunpack.c.h.b16 %v1885
        %v1965 = vunpack.c.l.b16 %v1886
        %v1966 = vunpack.c.h.b16 %v1886
        %v1967 = vunpack.c.l.b16 %v1887
        %v1968 = vunpack.c.h.b16 %v1887
        %v1969 = vunpack.c.l.b16 %v1888
        %v1970 = vunpack.c.h.b16 %v1888
        %v1971 = vunpack.c.l.b16 %v1889
        %v1972 = vunpack.c.h.b16 %v1889
        %v1973 = vunpack.c.l.b16 %v1890
        %v1974 = vunpack.c.h.b16 %v1890
        %v1975 = vunpack.c.l.b16 %v1891
        %v1976 = vunpack.c.h.b16 %v1891
        %v1977 = vunpack.c.l.b16 %v1892
        %v1978 = vunpack.c.h.b16 %v1892
        %v1979 = vunpack.c.l.b16 %v1893
        %v1980 = vunpack.c.h.b16 %v1893
        %v1981 = vunpack.c.l.b16 %v1894
        %v1982 = vunpack.c.h.b16 %v1894
        %v1983 = vunpack.c.l.b16 %v1895
        %v1984 = vunpack.c.h.b16 %v1895
        %v1985 = vunpack.c.l.b16 %v1896
        %v1986 = vunpack.c.h.b16 %v1896
        %v1987 = vunpack.c.l.b16 %v1897
        %v1988 = vunpack.c.h.b16 %v1897
        %v1989 = vunpack.c.l.b16 %v1898
        %v1990 = vunpack.c.h.b16 %v1898
        %v1991 = vunpack.c.l.b16 %v1899
        %v1992 = vunpack.c.h.b16 %v1899
        %v1993 = vunpack.c.l.b16 %v1900
        %v1994 = vunpack.c.h.b16 %v1900
        %v1995 = vunpack.c.l.b16 %v1901
        %v1996 = vunpack.c.h.b16 %v1901
        %v1997 = vunpack.c.l.b16 %v1902
        %v1998 = vunpack.c.h.b16 %v1902
        %v1999 = vunpack.c.l.b16 %v1903
        %v2000 = vunpack.c.h.b16 %v1903
        %v2001 = vunpack.c.l.b16 %v1904
        %v2002 = vunpack.c.h.b16 %v1904
        %v2003 = vpack.c.b16 %v1941, %v1939
        %v2004 = vpack.c.b16 %v1942, %v1940
        %v2005 = vpack.c.b16 %v1945, %v1943
        %v2006 = vpack.c.b16 %v1946, %v1944
        %v2007 = vpack.c.b16 %v1949, %v1947
        %v2008 = vpack.c.b16 %v1950, %v1948
        %v2009 = vpack.c.b16 %v1953, %v1951
        %v2010 = vpack.c.b16 %v1954, %v1952
        %v2011 = vpack.c.b16 %v1957, %v1955
        %v2012 = vpack.c.b16 %v1958, %v1956
        %v2013 = vpack.c.b16 %v1961, %v1959
        %v2014 = vpack.c.b16 %v1962, %v1960
        %v2015 = vpack.c.b16 %v1965, %v1963
        %v2016 = vpack.c.b16 %v1966, %v1964
        %v2017 = vpack.c.b16 %v1969, %v1967
        %v2018 = vpack.c.b16 %v1970, %v1968
        %v2019 = vpack.c.b16 %v1973, %v1971
        %v2020 = vpack.c.b16 %v1974, %v1972
        %v2021 = vpack.c.b16 %v1977, %v1975
        %v2022 = vpack.c.b16 %v1978, %v1976
        %v2023 = vpack.c.b16 %v1981, %v1979
        %v2024 = vpack.c.b16 %v1982, %v1980
        %v2025 = vpack.c.b16 %v1985, %v1983
        %v2026 = vpack.c.b16 %v1986, %v1984
        %v2027 = vpack.c.b16 %v1989, %v1987
        %v2028 = vpack.c.b16 %v1990, %v1988
        %v2029 = vpack.c.b16 %v1993, %v1991
        %v2030 = vpack.c.b16 %v1994, %v1992
        %v2031 = vpack.c.b16 %v1997, %v1995
        %v2032 = vpack.c.b16 %v1998, %v1996
        %v2033 = vpack.c.b16 %v2001, %v1999
        %v2034 = vpack.c.b16 %v2002, %v2000
        %2067 = vmatpush.bf16.msra.mxu0 %v2017
        %2068 = vmatpush.bf16.msra.mxu0 %v2015
        %2069 = vmatpush.bf16.msra.mxu0 %v2013
        %2070 = vmatpush.bf16.msra.mxu0 %v2011
        %2071 = vmatpush.bf16.msra.mxu0 %v2009
        %2072 = vmatpush.bf16.msra.mxu0 %v2007
        %2073 = vmatpush.bf16.msra.mxu0 %v2005
        %2074 = vmatpush.bf16.msra.mxu0 %v2003
        %2075 = vmatmul.bf16.gmra.mxu0 %v1870
        %v2076 = vpop.f32.mrf.mxu0
        %v2077 = vadd.f32 %v1905, %v2076
        %v2078 = vpop.f32.mrf.mxu0
        %v2079 = vadd.f32 %v1905, %v2078
        %2080 = vdwg.mxu0
        %2081 = vmatpush.bf16.msra.mxu0 %v2033
        %2082 = vmatpush.bf16.msra.mxu0 %v2031
        %2083 = vmatpush.bf16.msra.mxu0 %v2029
        %2084 = vmatpush.bf16.msra.mxu0 %v2027
        %2085 = vmatpush.bf16.msra.mxu0 %v2025
        %2086 = vmatpush.bf16.msra.mxu0 %v2023
        %2087 = vmatpush.bf16.msra.mxu0 %v2021
        %2088 = vmatpush.bf16.msra.mxu0 %v2019
        %2089 = vmatmul.bf16.gmra.mxu0 %v1871
        %v2090 = vpop.f32.mrf.mxu0
        %v2091 = vadd.f32 %v2077, %v2090
        %v2092 = vpop.f32.mrf.mxu0
        %v2093 = vadd.f32 %v2079, %v2092
        %2094 = vdwg.mxu0
        %2095 = vmatpush.bf16.msra.mxu0 %v2018
        %2096 = vmatpush.bf16.msra.mxu0 %v2016
        %2097 = vmatpush.bf16.msra.mxu0 %v2014
        %2098 = vmatpush.bf16.msra.mxu0 %v2012
        %2099 = vmatpush.bf16.msra.mxu0 %v2010
        %2100 = vmatpush.bf16.msra.mxu0 %v2008
        %2101 = vmatpush.bf16.msra.mxu0 %v2006
        %2102 = vmatpush.bf16.msra.mxu0 %v2004
        %2103 = vmatmul.bf16.gmra.mxu0 %v1870
        %v2104 = vpop.f32.mrf.mxu0
        %v2105 = vadd.f32 %v1906, %v2104
        %v2106 = vpop.f32.mrf.mxu0
        %v2107 = vadd.f32 %v1906, %v2106
        %2108 = vdwg.mxu0
        %2109 = vmatpush.bf16.msra.mxu0 %v2034
        %2110 = vmatpush.bf16.msra.mxu0 %v2032
        %2111 = vmatpush.bf16.msra.mxu0 %v2030
        %2112 = vmatpush.bf16.msra.mxu0 %v2028
        %2113 = vmatpush.bf16.msra.mxu0 %v2026
        %2114 = vmatpush.bf16.msra.mxu0 %v2024
        %2115 = vmatpush.bf16.msra.mxu0 %v2022
        %2116 = vmatpush.bf16.msra.mxu0 %v2020
        %2117 = vmatmul.bf16.gmra.mxu0 %v1871
        %v2118 = vpop.f32.mrf.mxu0
        %v2119 = vadd.f32 %v2105, %v2118
        %v2120 = vpop.f32.mrf.mxu0
        %v2121 = vadd.f32 %v2107, %v2120
        %2122 = vdwg.mxu0
        %v2123 = vmax.f32 %v2091, 0.0
        %v2124 = vmax.f32 %v2119, 0.0
        %v2125 = vmax.f32 %v2093, 0.0
        %v2126 = vmax.f32 %v2121, 0.0
        %v2127 = vpack.c.bf16 %v2125, %v2123
        %v2128 = vpack.c.bf16 %v2126, %v2124
        %v2129 = vld [vmem:[#allocation11] sm:$0xf]
        %v2130 = vld [vmem:[#allocation11 + $0x4] sm:$0xf]
        %v2131 = vld [vmem:[#allocation11 + $0x8] sm:$0xf]
        %v2132 = vld [vmem:[#allocation11 + $0xc] sm:$0xf]
        %v2133 = vld [vmem:[#allocation11 + $0x10] sm:$0xf]
        %v2134 = vld [vmem:[#allocation11 + $0x14] sm:$0xf]
        %v2135 = vld [vmem:[#allocation11 + $0x18] sm:$0xf]
        %v2136 = vld [vmem:[#allocation11 + $0x1c] sm:$0xf]
        %v2137 = vld [vmem:[#allocation11 + $0x20] sm:$0xf]
        %v2138 = vld [vmem:[#allocation11 + $0x24] sm:$0xf]
        %v2139 = vld [vmem:[#allocation11 + $0x28] sm:$0xf]
        %v2140 = vld [vmem:[#allocation11 + $0x2c] sm:$0xf]
        %v2141 = vld [vmem:[#allocation11 + $0x30] sm:$0xf]
        %v2142 = vld [vmem:[#allocation11 + $0x34] sm:$0xf]
        %v2143 = vld [vmem:[#allocation11 + $0x38] sm:$0xf]
        %v2144 = vld [vmem:[#allocation11 + $0x3c] sm:$0xf]
        %v2145 = vld [vmem:[#allocation11 + $0x40] sm:$0xf]
        %v2146 = vld [vmem:[#allocation11 + $0x44] sm:$0xf]
        %v2147 = vld [vmem:[#allocation11 + $0x48] sm:$0xf]
        %v2148 = vld [vmem:[#allocation11 + $0x4c] sm:$0xf]
        %v2149 = vld [vmem:[#allocation11 + $0x50] sm:$0xf]
        %v2150 = vld [vmem:[#allocation11 + $0x54] sm:$0xf]
        %v2151 = vld [vmem:[#allocation11 + $0x58] sm:$0xf]
        %v2152 = vld [vmem:[#allocation11 + $0x5c] sm:$0xf]
        %v2153 = vld [vmem:[#allocation11 + $0x60] sm:$0xf]
        %v2154 = vld [vmem:[#allocation11 + $0x64] sm:$0xf]
        %v2155 = vld [vmem:[#allocation11 + $0x68] sm:$0xf]
        %v2156 = vld [vmem:[#allocation11 + $0x6c] sm:$0xf]
        %v2157 = vld [vmem:[#allocation11 + $0x70] sm:$0xf]
        %v2158 = vld [vmem:[#allocation11 + $0x74] sm:$0xf]
        %v2159 = vld [vmem:[#allocation11 + $0x78] sm:$0xf]
        %v2160 = vld [vmem:[#allocation11 + $0x7c] sm:$0xf]
        %v2161 = vperm.slane %v478, 4
        %v2194 = vunpack.c.l.b16 %v2129
        %v2195 = vunpack.c.l.b16 %v2130
        %v2196 = vunpack.c.l.b16 %v2131
        %v2197 = vunpack.c.l.b16 %v2132
        %v2198 = vunpack.c.l.b16 %v2133
        %v2199 = vunpack.c.l.b16 %v2134
        %v2200 = vunpack.c.l.b16 %v2135
        %v2201 = vunpack.c.l.b16 %v2136
        %v2202 = vunpack.c.l.b16 %v2137
        %v2203 = vunpack.c.l.b16 %v2138
        %v2204 = vunpack.c.l.b16 %v2139
        %v2205 = vunpack.c.l.b16 %v2140
        %v2206 = vunpack.c.l.b16 %v2141
        %v2207 = vunpack.c.l.b16 %v2142
        %v2208 = vunpack.c.l.b16 %v2143
        %v2209 = vunpack.c.l.b16 %v2144
        %v2210 = vunpack.c.l.b16 %v2145
        %v2211 = vunpack.c.l.b16 %v2146
        %v2212 = vunpack.c.l.b16 %v2147
        %v2213 = vunpack.c.l.b16 %v2148
        %v2214 = vunpack.c.l.b16 %v2149
        %v2215 = vunpack.c.l.b16 %v2150
        %v2216 = vunpack.c.l.b16 %v2151
        %v2217 = vunpack.c.l.b16 %v2152
        %v2218 = vunpack.c.l.b16 %v2153
        %v2219 = vunpack.c.l.b16 %v2154
        %v2220 = vunpack.c.l.b16 %v2155
        %v2221 = vunpack.c.l.b16 %v2156
        %v2222 = vunpack.c.l.b16 %v2157
        %v2223 = vunpack.c.l.b16 %v2158
        %v2224 = vunpack.c.l.b16 %v2159
        %v2225 = vunpack.c.l.b16 %v2160
        %v2226 = vpack.c.b16 %v2195, %v2194
        %v2227 = vpack.c.b16 %v2197, %v2196
        %v2228 = vpack.c.b16 %v2199, %v2198
        %v2229 = vpack.c.b16 %v2201, %v2200
        %v2230 = vpack.c.b16 %v2203, %v2202
        %v2231 = vpack.c.b16 %v2205, %v2204
        %v2232 = vpack.c.b16 %v2207, %v2206
        %v2233 = vpack.c.b16 %v2209, %v2208
        %v2234 = vpack.c.b16 %v2211, %v2210
        %v2235 = vpack.c.b16 %v2213, %v2212
        %v2236 = vpack.c.b16 %v2215, %v2214
        %v2237 = vpack.c.b16 %v2217, %v2216
        %v2238 = vpack.c.b16 %v2219, %v2218
        %v2239 = vpack.c.b16 %v2221, %v2220
        %v2240 = vpack.c.b16 %v2223, %v2222
        %v2241 = vpack.c.b16 %v2225, %v2224
        %2258 = vmatpush.bf16.msra.mxu0 %v2233
        %2259 = vmatpush.bf16.msra.mxu0 %v2232
        %2260 = vmatpush.bf16.msra.mxu0 %v2231
        %2261 = vmatpush.bf16.msra.mxu0 %v2230
        %2262 = vmatpush.bf16.msra.mxu0 %v2229
        %2263 = vmatpush.bf16.msra.mxu0 %v2228
        %2264 = vmatpush.bf16.msra.mxu0 %v2227
        %2265 = vmatpush.bf16.msra.mxu0 %v2226
        %2266 = vmatmul.bf16.gmra.mxu0 %v2127
        %v2267 = vpop.f32.mrf.mxu0
        %v2268 = vadd.f32 %v2161, %v2267
        %v2269 = vpop.f32.mrf.mxu0
        %v2270 = vadd.f32 %v2161, %v2269
        %2271 = vdwg.mxu0
        %2272 = vmatpush.bf16.msra.mxu0 %v2241
        %2273 = vmatpush.bf16.msra.mxu0 %v2240
        %2274 = vmatpush.bf16.msra.mxu0 %v2239
        %2275 = vmatpush.bf16.msra.mxu0 %v2238
        %2276 = vmatpush.bf16.msra.mxu0 %v2237
        %2277 = vmatpush.bf16.msra.mxu0 %v2236
        %2278 = vmatpush.bf16.msra.mxu0 %v2235
        %2279 = vmatpush.bf16.msra.mxu0 %v2234
        %2280 = vmatmul.bf16.gmra.mxu0 %v2128
        %v2281 = vpop.f32.mrf.mxu0
        %v2282 = vadd.f32 %v2268, %v2281
        %v2283 = vpop.f32.mrf.mxu0
        %v2284 = vadd.f32 %v2270, %v2283
        %2285 = vdwg.mxu0
        %2286 = vst [vmem:[%s443] sm:$0xff] %v2282
        %2287 = vst [vmem:[%s443 + $0x8] sm:$0xff] %v2284
        %s2288 = sand.u32 %s199, 1
        %s2289 = scalar_lea.sflag [#allocation4], %s2288
        %s2290 = sand.u32 %s199, 1
        %s2291 = smul.addr %s2290, 16
        %s2292 = scalar_lea.vmem [#allocation14], %s2291
        // Predicated region
        $region77: #{net_ba_forward.1} parent=47 // pred_check
          %p2293 = pneg %p209
        $region78: #{net_ba_forward.1} parent=47 // pred_check_branch
          %2295 = sbr.rel (%p2293) target = $region80
        $region79: #{net_ba_forward.1} parent=47 // pred_region
          %2297 = vsyncadd %s2289, 0
          %s2298 = smul.addr %s29, 2
          %s2299 = smul.addr %s2298, 8
          %s2300 = scalar_lea.hbm %s7, %s2299
          %s2301 = sshll.u32 %s2292, 4
          %s2302 = int_to_ptr.vmem [resolvable:$true] %s2301
          %s2303 = sshll.u32 %s2300, 4
          %s2304 = int_to_ptr.hbm [resolvable:$true] %s2303
          %2309 = dma.vmem_to_hbm [thread:$0]  %s2302, 256, %s2304, %s2289, 128, 128, 8
        $region80: #{net_ba_forward.1} parent=47 // pred_fallthru
          _
      $region48: #{net_ba_forward.1} parent=5 // pred_fallthru
        _
      %p2310 = scmp.le.s32.totalorder 2, %s24
      // Predicated region
      $region81: #{net_ba_forward.1} parent=5 // pred_check
        %p2311 = pneg %p2310
      $region82: #{net_ba_forward.1} parent=5 // pred_check_branch
        %2313 = sbr.rel (%p2311) target = $region84
      $region83: #{net_ba_forward.1} parent=5 // pred_region
        %s2314 = ssub.s32 %s24, 2
        // Predicated region
        $region85: #{net_ba_forward.1} parent=83 // pred_check
          %p2315 = pneg %p215
        $region86: #{net_ba_forward.1} parent=83 // pred_check_branch
          %2317 = sbr.rel (%p2315) target = $region88
        $region87: #{net_ba_forward.1} parent=83 // pred_region
          %s2318 = sand.u32 %s200, 1
          %s2319 = scalar_lea.sflag [#allocation4], %s2318
          %s2320 = sand.u32 %s200, 1
          %s2321 = smul.addr %s2320, 16
          %s2322 = scalar_lea.vmem [#allocation14], %s2321
          %2324 = dma.done %s2319, 256
        $region88: #{net_ba_forward.1} parent=83 // pred_fallthru
          _
      $region84: #{net_ba_forward.1} parent=5 // pred_fallthru
        _
    $region6: #{net_ba_forward.1} parent=1 // loop_footer
      %s28 = sadd.s32 1, %s24
    $region7: #{net_ba_forward.1} parent=1 // loop_footer_branch
      %23 = sbr.rel target = $region3
    $region8: #{net_ba_forward.1} parent=1 // loop_exit
      _
    %2325 = vsyncpa [#allocation3], 1
    %s2326 = scalar_lea.sflag [#allocation3], 1
    %2327 = vsyncpa %s2326, 1
    %2328 = vsyncpa [#allocation6], 1
    %s2329 = scalar_lea.sflag [#allocation6], 1
    %2330 = vsyncpa %s2329, 1
    %2331 = vsyncpa [#allocation9], 1
    %2332 = vsyncpa [#allocation12], 1
    %2333 = vsyncpa [#allocation4], 1
    %s2334 = scalar_lea.sflag [#allocation4], 1
    %2335 = vsyncpa %s2334, 1

</llo_original>
